<compile_context>
chip_gen: v5e
topology: v5e:2x2
jax: 0.10.0
libtpu: 0.0.40
codegen_flags: <defaults>
</compile_context>

<pallas_src>
import jax
import jax.numpy as jnp
from jax.experimental import pallas as pl
from jax.experimental.pallas import tpu as pltpu

NOUT1 = 128            # fc11/fc21 width (== nout2 of SpectConv)
NOUT3 = 64             # fc12/fc13/fc22/fc23 width
NIN = NOUT1 + NOUT3    # 192 = true per-layer output width
NIN_PAD = 256          # lane-padded per-layer output width (2 lane groups)
F_PAD = 128            # lane-padded input feature width
N_PAD = 128            # node slots per graph (dataset nmax=126 -> pad to 128)
NCLS = 6
BN_EPS = 1e-5


# -------------------- Pallas kernel (hot path: both GNN layers fused, one graph/step) ------------

def _fused_layers_kernel(x_ref, a_ref,
                         wx1_ref, bx1_ref, wc1_ref, bc1_ref, s1_ref, t1_ref,
                         wx2_ref, bx2_ref, wc2_ref, bc2_ref, s2_ref, t2_ref,
                         o_ref, x1_scr):
    """One grid step = one graph.  Two fused GNNML1 blocks; per block:
         cat([relu(fc_a(x)) + relu(SpectConv(x)), relu(fc_b(x)) * relu(fc_c(x))], 1)
       followed by folded BatchNorm1d (eval): h * scale + shift.
       Layer-1 output lives in the VMEM scratch x1_scr; only the layer-2
       output goes back to HBM.  All matmul operands are bf16, accumulation f32."""
    a = a_ref[...]                                        # [N_PAD, N_PAD] bf16 (0/1 -> exact)

    def block(xb, wx_ref, bx_ref, wc_ref, bc_ref, s_ref, t_ref, out_ref):
        # xb: bf16 [N_PAD, Fin_pad]
        # SpectConv message passing: sum_j A[i, j] * x[j]  (dense MXU matmul, f32 acc)
        ax = jnp.dot(a, xb, preferred_element_type=jnp.float32)
        # One 256-lane MXU matmul for fc_a | fc_b | fc_c (fc_b/fc_c share lane group 1).
        hx = jnp.maximum(
            jnp.dot(xb, wx_ref[...], preferred_element_type=jnp.float32) + bx_ref[...],
            0.0)                                                       # [N, 256]
        hc = jnp.maximum(
            jnp.dot(ax.astype(jnp.bfloat16), wc_ref[...],
                    preferred_element_type=jnp.float32) + bc_ref[...],
            0.0)                                                       # [N, 128]
        h1 = hx[:, 0:NOUT1] + hc                                       # [N, 128]
        # relu(fc_b) * relu(fc_c): both live in lane group 1 as [b(64) | c(64)];
        # a 64-lane roll (XLU) lines c up under b.  The duplicated upper 64
        # lanes are zeroed by scale==0 below (and keep x1's pad columns zero).
        g = hx[:, NOUT1:NIN_PAD]                                       # [N, 128]
        h2 = g * pltpu.roll(g, shift=NOUT3, axis=1)                    # cols 0:64 = b*c
        # Folded BatchNorm (eval); both stores are full, unmasked 128-lane groups.
        out_ref[:, 0:NOUT1] = h1 * s_ref[:, 0:NOUT1] + t_ref[:, 0:NOUT1]
        out_ref[:, NOUT1:NIN_PAD] = h2 * s_ref[:, NOUT1:NIN_PAD] + t_ref[:, NOUT1:NIN_PAD]

    block(x_ref[...], wx1_ref, bx1_ref, wc1_ref, bc1_ref, s1_ref, t1_ref, x1_scr)
    block(x1_scr[...].astype(jnp.bfloat16),
          wx2_ref, bx2_ref, wc2_ref, bc2_ref, s2_ref, t2_ref, o_ref)


# -------------------- host-side parameter packing (lane padding + BN folding) --------------------

def _pack_layer(p, fin, fin_pad):
    """Pad input rows to fin_pad, pack the three x-side linears into a single
       [fin_pad, 256] bf16 weight (fc_a -> lanes 0:128, fc_b -> 128:192,
       fc_c -> 192:256), fold BN into f32 scale/shift [1, 256]."""
    wx = jnp.zeros((fin_pad, NIN_PAD), jnp.float32)
    wx = wx.at[:fin, 0:NOUT1].set(p["wfc1"])
    wx = wx.at[:fin, NOUT1:NOUT1 + NOUT3].set(p["wfc2"])
    wx = wx.at[:fin, NOUT1 + NOUT3:NIN_PAD].set(p["wfc3"])
    bx = jnp.zeros((1, NIN_PAD), jnp.float32)
    bx = bx.at[:, 0:NOUT1].set(p["bfc1"])
    bx = bx.at[:, NOUT1:NOUT1 + NOUT3].set(p["bfc2"])
    bx = bx.at[:, NOUT1 + NOUT3:NIN_PAD].set(p["bfc3"])
    wc = jnp.zeros((fin_pad, NOUT1), jnp.float32).at[:fin].set(p["wconv"])
    bc = p["bconv"]                                                   # [1, 128] f32
    scale = p["gamma"] / jnp.sqrt(p["var"] + BN_EPS)                  # [1, 192]
    shift = p["beta"] - p["mean"] * scale
    s = jnp.zeros((1, NIN_PAD), jnp.float32).at[:, :NIN].set(scale)   # pad cols: scale = 0
    t = jnp.zeros((1, NIN_PAD), jnp.float32).at[:, :NIN].set(shift)   # pad cols: shift = 0
    # Matmul operands shipped as bf16 (native bf16 MXU path, half the bytes);
    # biases / BN scale-shift stay f32 (VPU adds, exact).
    return (wx.astype(jnp.bfloat16), bx, wc.astype(jnp.bfloat16), bc, s, t)


def pack_params(params, num_features):
    return dict(l1=_pack_layer(params["l1"], num_features, F_PAD),
                l2=_pack_layer(params["l2"], NIN, NIN_PAD),
                w2=params["w2"], b2=params["b2"])


# -------------------- forward --------------------

def gnnml1_forward(x, A, n_nodes, packed):
    """x:       [G, N_PAD, F] f32 node features (zero rows on padded node slots)
       A:       [G, N_PAD, N_PAD] f32 0/1 adjacency (zero rows/cols on padded slots)
       n_nodes: [G] int32 valid node count per graph."""
    G, n_pad, f = x.shape
    x_pad = (jnp.zeros((G, n_pad, F_PAD), jnp.float32).at[:, :, :f].set(x)
             .astype(jnp.bfloat16))
    a_bf16 = A.astype(jnp.bfloat16)           # exact: edge_attr = ones -> 0/1 entries

    l1, l2 = packed["l1"], packed["l2"]
    args = (x_pad, a_bf16) + l1 + l2
    graph_specs = [
        pl.BlockSpec((None, n_pad, F_PAD), lambda g: (g, 0, 0)),      # per-graph x tile
        pl.BlockSpec((None, n_pad, n_pad), lambda g: (g, 0, 0)),      # per-graph A tile
    ]
    # Constant index_maps -> weights / folded BN stay VMEM-resident across grid steps.
    weight_specs = [pl.BlockSpec(w.shape, lambda g: (0, 0)) for w in l1 + l2]

    x2_pad = pl.pallas_call(
        _fused_layers_kernel,
        grid=(G,),
        in_specs=graph_specs + weight_specs,
        out_specs=pl.BlockSpec((None, n_pad, NIN_PAD), lambda g: (g, 0, 0)),
        out_shape=jax.ShapeDtypeStruct((G, n_pad, NIN_PAD), jnp.float32),
        scratch_shapes=[pltpu.VMEM((n_pad, NIN_PAD), jnp.float32)],   # x1 stays on-chip
        compiler_params=pltpu.CompilerParams(
            dimension_semantics=("parallel",)),   # v7x: shard graphs across the 2 TCs
    )(*args)

    # TODO(synk): global_mean_pool / global_max_pool + fc2 + log_softmax head is a
    # tiny data-dependent [G,384]@[384,6] epilogue -> left in plain JAX (a Pallas
    # kernel here would be pure launch + masked-store overhead).
    mask = jnp.arange(n_pad)[None, :] < n_nodes[:, None]              # [G, N_PAD]
    cnt = jnp.maximum(n_nodes.astype(jnp.float32), 1.0)[:, None]      # empty-segment guard
    mean_pool = jnp.sum(jnp.where(mask[..., None], x2_pad, 0.0), axis=1) / cnt
    max_pool = jnp.max(jnp.where(mask[..., None], x2_pad, -jnp.inf), axis=1)
    pooled = jnp.concatenate([mean_pool[:, :NIN], max_pool[:, :NIN]], axis=1)  # [G, 384]
    z = pooled @ packed["w2"] + packed["b2"]
    return jax.nn.log_softmax(z, axis=1)


# -------------------- deterministic parameter init --------------------

def _lin(k, fin, fout, scale=0.1):
    kw, kb = jax.random.split(k)
    return (scale * jax.random.normal(kw, (fin, fout), jnp.float32),
            scale * jax.random.normal(kb, (1, fout), jnp.float32))


def _layer_params(k, fin):
    k1, k2, k3, k4, k5 = jax.random.split(k, 5)
    wfc1, bfc1 = _lin(k1, fin, NOUT1)          # fc11 / fc21
    wconv, bconv = _lin(k2, fin, NOUT1)        # SpectConv weight [S=1, fin, 128] -> [fin, 128]
    wfc2, bfc2 = _lin(k3, fin, NOUT3)          # fc12 / fc22
    wfc3, bfc3 = _lin(k4, fin, NOUT3)          # fc13 / fc23
    kg, kb = jax.random.split(k5)
    return dict(wfc1=wfc1, bfc1=bfc1, wconv=wconv, bconv=bconv,
                wfc2=wfc2, bfc2=bfc2, wfc3=wfc3, bfc3=bfc3,
                gamma=1.0 + 0.1 * jax.random.normal(kg, (1, NIN), jnp.float32),
                beta=0.1 * jax.random.normal(kb, (1, NIN), jnp.float32),
                mean=jnp.zeros((1, NIN), jnp.float32),
                var=jnp.ones((1, NIN), jnp.float32))


def init_params(key, num_features):
    k1, k2, k3 = jax.random.split(key, 3)
    w2, b2 = _lin(k3, 2 * NIN, NCLS)           # fc2: [384 -> 6]
    return dict(l1=_layer_params(k1, num_features),
                l2=_layer_params(k2, NIN),
                w2=w2, b2=b2)


# -------------------- pure-JAX reference (for checking) --------------------

def reference_forward(x, A, n_nodes, params, mm_dtype=jnp.float32):
    """Padded/batched reference with masked pooling.
       mm_dtype=float32  -> faithful f32 PyTorch (eval) semantics.
       mm_dtype=bfloat16 -> same operand-precision policy as the kernel
                            (bf16 matmul operands, f32 accumulation)."""
    cast = lambda v: v.astype(mm_dtype)

    def mm(a, b):
        return jnp.matmul(cast(a), cast(b), preferred_element_type=jnp.float32)

    def layer(h, p):
        ah = mm(A, h)
        pa = jax.nn.relu(mm(h, p["wfc1"]) + p["bfc1"]) + \
             jax.nn.relu(mm(ah, p["wconv"]) + p["bconv"])
        pb = jax.nn.relu(mm(h, p["wfc2"]) + p["bfc2"]) * \
             jax.nn.relu(mm(h, p["wfc3"]) + p["bfc3"])
        hc = jnp.concatenate([pa, pb], axis=-1)
        return (hc - p["mean"]) * p["gamma"] / jnp.sqrt(p["var"] + BN_EPS) + p["beta"]

    x1 = layer(x, params["l1"])
    x2 = layer(x1, params["l2"])
    mask = jnp.arange(x.shape[1])[None, :] < n_nodes[:, None]
    cnt = jnp.maximum(n_nodes.astype(jnp.float32), 1.0)[:, None]
    mean_pool = jnp.sum(jnp.where(mask[..., None], x2, 0.0), axis=1) / cnt
    max_pool = jnp.max(jnp.where(mask[..., None], x2, -jnp.inf), axis=1)
    pooled = jnp.concatenate([mean_pool, max_pool], axis=1)
    z = pooled @ params["w2"] + params["b2"]
    return jax.nn.log_softmax(z, axis=1)


if __name__ == "__main__":
    key = jax.random.PRNGKey(0)
    G, F = 4, 22                                   # graphs per batch, ENZYMES cont-feat width
    n_nodes = jnp.array([96, 64, 128, 80], jnp.int32)
    k_x, k_a, k_p = jax.random.split(key, 3)

    node_mask = (jnp.arange(N_PAD)[None, :] < n_nodes[:, None]).astype(jnp.float32)
    x = jax.random.normal(k_x, (G, N_PAD, F), jnp.float32) * node_mask[..., None]
    # Deterministic random undirected graphs, no self-loops (dense adjacency stand-in
    # for edge_index with edge_attr = ones), zeroed outside each graph's valid nodes.
    up = jnp.triu(jax.random.bernoulli(k_a, 0.08, (G, N_PAD, N_PAD)).astype(jnp.float32), 1)
    A = (up + jnp.swapaxes(up, 1, 2)) * node_mask[:, :, None] * node_mask[:, None, :]

    params = init_params(k_p, F)
    packed = pack_params(params, F)

    out = gnnml1_forward(x, A, n_nodes, packed)
    out = jax.block_until_ready(out)
    assert out.shape == (G, NCLS)

    # (1) Exact-structure check: reference with the SAME bf16-operand / f32-accumulation
    #     policy as the kernel (validates weight packing, the roll trick, BN folding,
    #     the fused two-layer pipeline, the graph grid and the masked pooling).
    ref_matched = reference_forward(x, A, n_nodes, params, mm_dtype=jnp.bfloat16)
    assert bool(jnp.allclose(out, ref_matched, atol=5e-3, rtol=5e-3)), \
        "mismatch vs precision-matched reference"

    # (2) Coarse sanity bound vs the full-f32 reference (the review's correctness
    #     concern): quantifies bf16-operand drift through two message-passing layers
    #     (O(1e-2..1e-1) on the log-probs at these weight scales) and catches any
    #     gross wiring error; it is not a precision claim.
    ref_f32 = reference_forward(x, A, n_nodes, params, mm_dtype=jnp.float32)
    assert bool(jnp.allclose(out, ref_f32, atol=3e-1, rtol=0.0)), \
        "bf16-operand drift vs f32 reference exceeded sanity bound"

    print("KERNEL_OK")
</pallas_src>

<mosaic_0001>
module attributes {stable_mosaic.version = 11 : i64} {
  func.func @_fused_layers_kernel(%arg0: i32, %arg1: memref<1x128x128xbf16, #tpu.memory_space<vmem>>, %arg2: memref<1x128x128xbf16, #tpu.memory_space<vmem>>, %arg3: memref<128x256xbf16, #tpu.memory_space<vmem>>, %arg4: memref<1x256xf32, #tpu.memory_space<vmem>>, %arg5: memref<128x128xbf16, #tpu.memory_space<vmem>>, %arg6: memref<1x128xf32, #tpu.memory_space<vmem>>, %arg7: memref<1x256xf32, #tpu.memory_space<vmem>>, %arg8: memref<1x256xf32, #tpu.memory_space<vmem>>, %arg9: memref<256x256xbf16, #tpu.memory_space<vmem>>, %arg10: memref<1x256xf32, #tpu.memory_space<vmem>>, %arg11: memref<256x128xbf16, #tpu.memory_space<vmem>>, %arg12: memref<1x128xf32, #tpu.memory_space<vmem>>, %arg13: memref<1x256xf32, #tpu.memory_space<vmem>>, %arg14: memref<1x256xf32, #tpu.memory_space<vmem>>, %arg15: memref<1x128x256xf32, #tpu.memory_space<vmem>>, %arg16: memref<128x256xf32, #tpu.memory_space<vmem>>) attributes {dimension_semantics = [#tpu.dimension_semantics<parallel>], iteration_bounds = array<i64: 4>, scalar_prefetch = 0 : i64, scratch_operands = 1 : i64, tpu.core_type = #tpu.core_type<tc>, window_params = [{transform_indices = @transform_0, window_bounds = array<i64: 1, 128, 128>}, {transform_indices = @transform_1, window_bounds = array<i64: 1, 128, 128>}, {pipeline_mode = #tpu.pipeline_mode<synchronous>, transform_indices = @transform_2, window_bounds = array<i64: 128, 256>}, {pipeline_mode = #tpu.pipeline_mode<synchronous>, transform_indices = @transform_3, window_bounds = array<i64: 1, 256>}, {pipeline_mode = #tpu.pipeline_mode<synchronous>, transform_indices = @transform_4, window_bounds = array<i64: 128, 128>}, {pipeline_mode = #tpu.pipeline_mode<synchronous>, transform_indices = @transform_5, window_bounds = array<i64: 1, 128>}, {pipeline_mode = #tpu.pipeline_mode<synchronous>, transform_indices = @transform_6, window_bounds = array<i64: 1, 256>}, {pipeline_mode = #tpu.pipeline_mode<synchronous>, transform_indices = @transform_7, window_bounds = array<i64: 1, 256>}, {pipeline_mode = #tpu.pipeline_mode<synchronous>, transform_indices = @transform_8, window_bounds = array<i64: 256, 256>}, {pipeline_mode = #tpu.pipeline_mode<synchronous>, transform_indices = @transform_9, window_bounds = array<i64: 1, 256>}, {pipeline_mode = #tpu.pipeline_mode<synchronous>, transform_indices = @transform_10, window_bounds = array<i64: 256, 128>}, {pipeline_mode = #tpu.pipeline_mode<synchronous>, transform_indices = @transform_11, window_bounds = array<i64: 1, 128>}, {pipeline_mode = #tpu.pipeline_mode<synchronous>, transform_indices = @transform_12, window_bounds = array<i64: 1, 256>}, {pipeline_mode = #tpu.pipeline_mode<synchronous>, transform_indices = @transform_13, window_bounds = array<i64: 1, 256>}, {transform_indices = @transform_14, window_bounds = array<i64: 1, 128, 256>}]} {
    %c0 = arith.constant 0 : index
    %c0_0 = arith.constant 0 : index
    %c0_1 = arith.constant 0 : index
    %0 = vector.load %arg2[%c0, %c0_0, %c0_1] : memref<1x128x128xbf16, #tpu.memory_space<vmem>>, vector<1x128x128xbf16>
    %1 = vector.shape_cast %0 : vector<1x128x128xbf16> to vector<128x128xbf16>
    %c0_2 = arith.constant 0 : index
    %c0_3 = arith.constant 0 : index
    %c0_4 = arith.constant 0 : index
    %2 = vector.load %arg1[%c0_2, %c0_3, %c0_4] : memref<1x128x128xbf16, #tpu.memory_space<vmem>>, vector<1x128x128xbf16>
    %3 = vector.shape_cast %2 : vector<1x128x128xbf16> to vector<128x128xbf16>
    %cst = arith.constant dense<0.000000e+00> : vector<128x128xf32>
    %4 = tpu.matmul %1, %3, %cst {dimension_numbers = #tpu.dot_dimension_numbers<[1], [0], [0], [1], [0, 0, 1, 1], [], []>} : vector<128x128xbf16>, vector<128x128xbf16>, vector<128x128xf32> -> vector<128x128xf32>
    %c0_5 = arith.constant 0 : index
    %c0_6 = arith.constant 0 : index
    %5 = vector.load %arg3[%c0_5, %c0_6] : memref<128x256xbf16, #tpu.memory_space<vmem>>, vector<128x256xbf16>
    %cst_7 = arith.constant dense<0.000000e+00> : vector<128x256xf32>
    %6 = tpu.matmul %3, %5, %cst_7 {dimension_numbers = #tpu.dot_dimension_numbers<[1], [0], [0], [1], [0, 0, 1, 1], [], []>} : vector<128x128xbf16>, vector<128x256xbf16>, vector<128x256xf32> -> vector<128x256xf32>
    %c0_8 = arith.constant 0 : index
    %c0_9 = arith.constant 0 : index
    %7 = vector.load %arg4[%c0_8, %c0_9] : memref<1x256xf32, #tpu.memory_space<vmem>>, vector<1x256xf32>
    %8 = vector.broadcast %7 : vector<1x256xf32> to vector<128x256xf32>
    %9 = arith.addf %6, %8 : vector<128x256xf32>
    %cst_10 = arith.constant 0.000000e+00 : f32
    %10 = vector.broadcast %cst_10 : f32 to vector<128x256xf32>
    %11 = arith.maximumf %9, %10 : vector<128x256xf32>
    %12 = arith.truncf %4 : vector<128x128xf32> to vector<128x128xbf16>
    %c0_11 = arith.constant 0 : index
    %c0_12 = arith.constant 0 : index
    %13 = vector.load %arg5[%c0_11, %c0_12] : memref<128x128xbf16, #tpu.memory_space<vmem>>, vector<128x128xbf16>
    %cst_13 = arith.constant dense<0.000000e+00> : vector<128x128xf32>
    %14 = tpu.matmul %12, %13, %cst_13 {dimension_numbers = #tpu.dot_dimension_numbers<[1], [0], [0], [1], [0, 0, 1, 1], [], []>} : vector<128x128xbf16>, vector<128x128xbf16>, vector<128x128xf32> -> vector<128x128xf32>
    %c0_14 = arith.constant 0 : index
    %c0_15 = arith.constant 0 : index
    %15 = vector.load %arg6[%c0_14, %c0_15] : memref<1x128xf32, #tpu.memory_space<vmem>>, vector<1x128xf32>
    %16 = vector.broadcast %15 : vector<1x128xf32> to vector<128x128xf32>
    %17 = arith.addf %14, %16 : vector<128x128xf32>
    %cst_16 = arith.constant 0.000000e+00 : f32
    %18 = vector.broadcast %cst_16 : f32 to vector<128x128xf32>
    %19 = arith.maximumf %17, %18 : vector<128x128xf32>
    %20 = vector.extract_strided_slice %11 {offsets = [0, 0], sizes = [128, 128], strides = [1, 1]} : vector<128x256xf32> to vector<128x128xf32>
    %21 = arith.addf %20, %19 : vector<128x128xf32>
    %22 = vector.extract_strided_slice %11 {offsets = [0, 128], sizes = [128, 128], strides = [1, 1]} : vector<128x256xf32> to vector<128x128xf32>
    %c64_i32 = arith.constant 64 : i32
    %23 = tpu.dynamic_rotate %22 by %c64_i32 dim 1 : vector<128x128xf32>, i32 -> vector<128x128xf32>
    %24 = arith.mulf %22, %23 : vector<128x128xf32>
    %c0_17 = arith.constant 0 : index
    %c0_18 = arith.constant 0 : index
    %25 = vector.load %arg7[%c0_17, %c0_18] : memref<1x256xf32, #tpu.memory_space<vmem>>, vector<1x128xf32>
    %26 = vector.broadcast %25 : vector<1x128xf32> to vector<128x128xf32>
    %27 = arith.mulf %21, %26 : vector<128x128xf32>
    %c0_19 = arith.constant 0 : index
    %c0_20 = arith.constant 0 : index
    %28 = vector.load %arg8[%c0_19, %c0_20] : memref<1x256xf32, #tpu.memory_space<vmem>>, vector<1x128xf32>
    %29 = vector.broadcast %28 : vector<1x128xf32> to vector<128x128xf32>
    %30 = arith.addf %27, %29 : vector<128x128xf32>
    %c0_21 = arith.constant 0 : index
    %c0_22 = arith.constant 0 : index
    %31 = vector.load %arg16[%c0_21, %c0_22] : memref<128x256xf32, #tpu.memory_space<vmem>>, vector<128x128xf32>
    tpu.vector_store %arg16[%c0_21, %c0_22], %30 {strides = array<i32>} : memref<128x256xf32, #tpu.memory_space<vmem>>, vector<128x128xf32>,
    %c0_23 = arith.constant 0 : index
    %c128 = arith.constant 128 : index
    %32 = vector.load %arg7[%c0_23, %c128] : memref<1x256xf32, #tpu.memory_space<vmem>>, vector<1x128xf32>
    %33 = vector.broadcast %32 : vector<1x128xf32> to vector<128x128xf32>
    %34 = arith.mulf %24, %33 : vector<128x128xf32>
    %c0_24 = arith.constant 0 : index
    %c128_25 = arith.constant 128 : index
    %35 = vector.load %arg8[%c0_24, %c128_25] : memref<1x256xf32, #tpu.memory_space<vmem>>, vector<1x128xf32>
    %36 = vector.broadcast %35 : vector<1x128xf32> to vector<128x128xf32>
    %37 = arith.addf %34, %36 : vector<128x128xf32>
    %c0_26 = arith.constant 0 : index
    %c128_27 = arith.constant 128 : index
    %38 = vector.load %arg16[%c0_26, %c128_27] : memref<128x256xf32, #tpu.memory_space<vmem>>, vector<128x128xf32>
    tpu.vector_store %arg16[%c0_26, %c128_27], %37 {strides = array<i32>} : memref<128x256xf32, #tpu.memory_space<vmem>>, vector<128x128xf32>,
    %c0_28 = arith.constant 0 : index
    %c0_29 = arith.constant 0 : index
    %39 = vector.load %arg16[%c0_28, %c0_29] : memref<128x256xf32, #tpu.memory_space<vmem>>, vector<128x256xf32>
    %40 = arith.truncf %39 : vector<128x256xf32> to vector<128x256xbf16>
    %cst_30 = arith.constant dense<0.000000e+00> : vector<128x256xf32>
    %41 = tpu.matmul %1, %40, %cst_30 {dimension_numbers = #tpu.dot_dimension_numbers<[1], [0], [0], [1], [0, 0, 1, 1], [], []>} : vector<128x128xbf16>, vector<128x256xbf16>, vector<128x256xf32> -> vector<128x256xf32>
    %c0_31 = arith.constant 0 : index
    %c0_32 = arith.constant 0 : index
    %42 = vector.load %arg9[%c0_31, %c0_32] : memref<256x256xbf16, #tpu.memory_space<vmem>>, vector<256x256xbf16>
    %cst_33 = arith.constant dense<0.000000e+00> : vector<128x256xf32>
    %43 = tpu.matmul %40, %42, %cst_33 {dimension_numbers = #tpu.dot_dimension_numbers<[1], [0], [0], [1], [0, 0, 1, 1], [], []>} : vector<128x256xbf16>, vector<256x256xbf16>, vector<128x256xf32> -> vector<128x256xf32>
    %c0_34 = arith.constant 0 : index
    %c0_35 = arith.constant 0 : index
    %44 = vector.load %arg10[%c0_34, %c0_35] : memref<1x256xf32, #tpu.memory_space<vmem>>, vector<1x256xf32>
    %45 = vector.broadcast %44 : vector<1x256xf32> to vector<128x256xf32>
    %46 = arith.addf %43, %45 : vector<128x256xf32>
    %cst_36 = arith.constant 0.000000e+00 : f32
    %47 = vector.broadcast %cst_36 : f32 to vector<128x256xf32>
    %48 = arith.maximumf %46, %47 : vector<128x256xf32>
    %49 = arith.truncf %41 : vector<128x256xf32> to vector<128x256xbf16>
    %c0_37 = arith.constant 0 : index
    %c0_38 = arith.constant 0 : index
    %50 = vector.load %arg11[%c0_37, %c0_38] : memref<256x128xbf16, #tpu.memory_space<vmem>>, vector<256x128xbf16>
    %cst_39 = arith.constant dense<0.000000e+00> : vector<128x128xf32>
    %51 = tpu.matmul %49, %50, %cst_39 {dimension_numbers = #tpu.dot_dimension_numbers<[1], [0], [0], [1], [0, 0, 1, 1], [], []>} : vector<128x256xbf16>, vector<256x128xbf16>, vector<128x128xf32> -> vector<128x128xf32>
    %c0_40 = arith.constant 0 : index
    %c0_41 = arith.constant 0 : index
    %52 = vector.load %arg12[%c0_40, %c0_41] : memref<1x128xf32, #tpu.memory_space<vmem>>, vector<1x128xf32>
    %53 = vector.broadcast %52 : vector<1x128xf32> to vector<128x128xf32>
    %54 = arith.addf %51, %53 : vector<128x128xf32>
    %cst_42 = arith.constant 0.000000e+00 : f32
    %55 = vector.broadcast %cst_42 : f32 to vector<128x128xf32>
    %56 = arith.maximumf %54, %55 : vector<128x128xf32>
    %57 = vector.extract_strided_slice %48 {offsets = [0, 0], sizes = [128, 128], strides = [1, 1]} : vector<128x256xf32> to vector<128x128xf32>
    %58 = arith.addf %57, %56 : vector<128x128xf32>
    %59 = vector.extract_strided_slice %48 {offsets = [0, 128], sizes = [128, 128], strides = [1, 1]} : vector<128x256xf32> to vector<128x128xf32>
    %c64_i32_43 = arith.constant 64 : i32
    %60 = tpu.dynamic_rotate %59 by %c64_i32_43 dim 1 : vector<128x128xf32>, i32 -> vector<128x128xf32>
    %61 = arith.mulf %59, %60 : vector<128x128xf32>
    %c0_44 = arith.constant 0 : index
    %c0_45 = arith.constant 0 : index
    %62 = vector.load %arg13[%c0_44, %c0_45] : memref<1x256xf32, #tpu.memory_space<vmem>>, vector<1x128xf32>
    %63 = vector.broadcast %62 : vector<1x128xf32> to vector<128x128xf32>
    %64 = arith.mulf %58, %63 : vector<128x128xf32>
    %c0_46 = arith.constant 0 : index
    %c0_47 = arith.constant 0 : index
    %65 = vector.load %arg14[%c0_46, %c0_47] : memref<1x256xf32, #tpu.memory_space<vmem>>, vector<1x128xf32>
    %66 = vector.broadcast %65 : vector<1x128xf32> to vector<128x128xf32>
    %67 = arith.addf %64, %66 : vector<128x128xf32>
    %c0_48 = arith.constant 0 : index
    %c0_49 = arith.constant 0 : index
    %c0_50 = arith.constant 0 : index
    %68 = vector.load %arg15[%c0_48, %c0_49, %c0_50] : memref<1x128x256xf32, #tpu.memory_space<vmem>>, vector<1x128x128xf32>
    %69 = vector.shape_cast %68 : vector<1x128x128xf32> to vector<128x128xf32>
    %70 = vector.shape_cast %67 : vector<128x128xf32> to vector<1x128x128xf32>
    tpu.vector_store %arg15[%c0_48, %c0_49, %c0_50], %70 {strides = array<i32>} : memref<1x128x256xf32, #tpu.memory_space<vmem>>, vector<1x128x128xf32>,
    %c0_51 = arith.constant 0 : index
    %c128_52 = arith.constant 128 : index
    %71 = vector.load %arg13[%c0_51, %c128_52] : memref<1x256xf32, #tpu.memory_space<vmem>>, vector<1x128xf32>
    %72 = vector.broadcast %71 : vector<1x128xf32> to vector<128x128xf32>
    %73 = arith.mulf %61, %72 : vector<128x128xf32>
    %c0_53 = arith.constant 0 : index
    %c128_54 = arith.constant 128 : index
    %74 = vector.load %arg14[%c0_53, %c128_54] : memref<1x256xf32, #tpu.memory_space<vmem>>, vector<1x128xf32>
    %75 = vector.broadcast %74 : vector<1x128xf32> to vector<128x128xf32>
    %76 = arith.addf %73, %75 : vector<128x128xf32>
    %c0_55 = arith.constant 0 : index
    %c0_56 = arith.constant 0 : index
    %c128_57 = arith.constant 128 : index
    %77 = vector.load %arg15[%c0_55, %c0_56, %c128_57] : memref<1x128x256xf32, #tpu.memory_space<vmem>>, vector<1x128x128xf32>
    %78 = vector.shape_cast %77 : vector<1x128x128xf32> to vector<128x128xf32>
    %79 = vector.shape_cast %76 : vector<128x128xf32> to vector<1x128x128xf32>
    tpu.vector_store %arg15[%c0_55, %c0_56, %c128_57], %79 {strides = array<i32>} : memref<1x128x256xf32, #tpu.memory_space<vmem>>, vector<1x128x128xf32>,
    return
  }
  func.func @transform_0(%arg0: i32) -> (i32, i32, i32) {
    %c0_i32 = arith.constant 0 : i32
    %c0_i32_0 = arith.constant 0 : i32
    %c0_i32_1 = arith.constant 0 : i32
    return %arg0, %c0_i32, %c0_i32_0 : i32, i32, i32
  }
  func.func @transform_1(%arg0: i32) -> (i32, i32, i32) {
    %c0_i32 = arith.constant 0 : i32
    %c0_i32_0 = arith.constant 0 : i32
    %c0_i32_1 = arith.constant 0 : i32
    return %arg0, %c0_i32, %c0_i32_0 : i32, i32, i32
  }
  func.func @transform_2(%arg0: i32) -> (i32, i32) {
    %c0_i32 = arith.constant 0 : i32
    %c0_i32_0 = arith.constant 0 : i32
    %c0_i32_1 = arith.constant 0 : i32
    return %c0_i32, %c0_i32_0 : i32, i32
  }
  func.func @transform_3(%arg0: i32) -> (i32, i32) {
    %c0_i32 = arith.constant 0 : i32
    %c0_i32_0 = arith.constant 0 : i32
    %c0_i32_1 = arith.constant 0 : i32
    return %c0_i32, %c0_i32_0 : i32, i32
  }
  func.func @transform_4(%arg0: i32) -> (i32, i32) {
    %c0_i32 = arith.constant 0 : i32
    %c0_i32_0 = arith.constant 0 : i32
    %c0_i32_1 = arith.constant 0 : i32
    return %c0_i32, %c0_i32_0 : i32, i32
  }
  func.func @transform_5(%arg0: i32) -> (i32, i32) {
    %c0_i32 = arith.constant 0 : i32
    %c0_i32_0 = arith.constant 0 : i32
    %c0_i32_1 = arith.constant 0 : i32
    return %c0_i32, %c0_i32_0 : i32, i32
  }
  func.func @transform_6(%arg0: i32) -> (i32, i32) {
    %c0_i32 = arith.constant 0 : i32
    %c0_i32_0 = arith.constant 0 : i32
    %c0_i32_1 = arith.constant 0 : i32
    return %c0_i32, %c0_i32_0 : i32, i32
  }
  func.func @transform_7(%arg0: i32) -> (i32, i32) {
    %c0_i32 = arith.constant 0 : i32
    %c0_i32_0 = arith.constant 0 : i32
    %c0_i32_1 = arith.constant 0 : i32
    return %c0_i32, %c0_i32_0 : i32, i32
  }
  func.func @transform_8(%arg0: i32) -> (i32, i32) {
    %c0_i32 = arith.constant 0 : i32
    %c0_i32_0 = arith.constant 0 : i32
    %c0_i32_1 = arith.constant 0 : i32
    return %c0_i32, %c0_i32_0 : i32, i32
  }
  func.func @transform_9(%arg0: i32) -> (i32, i32) {
    %c0_i32 = arith.constant 0 : i32
    %c0_i32_0 = arith.constant 0 : i32
    %c0_i32_1 = arith.constant 0 : i32
    return %c0_i32, %c0_i32_0 : i32, i32
  }
  func.func @transform_10(%arg0: i32) -> (i32, i32) {
    %c0_i32 = arith.constant 0 : i32
    %c0_i32_0 = arith.constant 0 : i32
    %c0_i32_1 = arith.constant 0 : i32
    return %c0_i32, %c0_i32_0 : i32, i32
  }
  func.func @transform_11(%arg0: i32) -> (i32, i32) {
    %c0_i32 = arith.constant 0 : i32
    %c0_i32_0 = arith.constant 0 : i32
    %c0_i32_1 = arith.constant 0 : i32
    return %c0_i32, %c0_i32_0 : i32, i32
  }
  func.func @transform_12(%arg0: i32) -> (i32, i32) {
    %c0_i32 = arith.constant 0 : i32
    %c0_i32_0 = arith.constant 0 : i32
    %c0_i32_1 = arith.constant 0 : i32
    return %c0_i32, %c0_i32_0 : i32, i32
  }
  func.func @transform_13(%arg0: i32) -> (i32, i32) {
    %c0_i32 = arith.constant 0 : i32
    %c0_i32_0 = arith.constant 0 : i32
    %c0_i32_1 = arith.constant 0 : i32
    return %c0_i32, %c0_i32_0 : i32, i32
  }
  func.func @transform_14(%arg0: i32) -> (i32, i32, i32) {
    %c0_i32 = arith.constant 0 : i32
    %c0_i32_0 = arith.constant 0 : i32
    %c0_i32_1 = arith.constant 0 : i32
    return %arg0, %c0_i32, %c0_i32_0 : i32, i32, i32
  }
}

</mosaic_0001>

<llo_original>
// kernel: tpu_custom_call.1
$region0: #{tpu_custom_call.1}
  #allocation0 [shape = 'u32[]', space=smem, size = 0x4, offset = 0x4, fixed_abs, tag = 'smem constant byte address 0x4 - core index']
  #allocation1 [shape = 'u32[72,128]{1,0:T(1,128)}', space=vmem, size = 0x9000, scoped, tag = 'internal scratch']
  #allocation2 [shape = 'f32[128,256]{1,0:T(8,128)}', space=vmem, size = 0x20000, scoped, tag = 'scratch operand']
  %s0 = inlined_call_operand.hbm [shape: bf16[4,128,128], index: 0, kind: input, shape index: {}]
  %s1 = inlined_call_operand.hbm [shape: bf16[4,128,128], index: 1, kind: input, shape index: {}]
  %s2 = inlined_call_operand.hbm [shape: bf16[128,256], index: 2, kind: input, shape index: {}]
  %s3 = inlined_call_operand.vmem [shape: f32[1,256], index: 3, kind: input, shape index: {}]
  %s4 = inlined_call_operand.hbm [shape: bf16[128,128], index: 4, kind: input, shape index: {}]
  %s5 = inlined_call_operand.hbm [shape: f32[1,128], index: 5, kind: input, shape index: {}]
  %s6 = inlined_call_operand.vmem [shape: f32[1,256], index: 6, kind: input, shape index: {}]
  %s7 = inlined_call_operand.vmem [shape: f32[1,256], index: 7, kind: input, shape index: {}]
  %s8 = inlined_call_operand.hbm [shape: bf16[256,256], index: 8, kind: input, shape index: {}]
  %s9 = inlined_call_operand.vmem [shape: f32[1,256], index: 9, kind: input, shape index: {}]
  %s10 = inlined_call_operand.hbm [shape: bf16[256,128], index: 10, kind: input, shape index: {}]
  %s11 = inlined_call_operand.hbm [shape: f32[1,128], index: 11, kind: input, shape index: {}]
  %s12 = inlined_call_operand.vmem [shape: f32[1,256], index: 12, kind: input, shape index: {}]
  %s13 = inlined_call_operand.vmem [shape: f32[1,256], index: 13, kind: input, shape index: {}]
  %s14 = inlined_call_operand.hbm [shape: f32[4,128,256], index: 14, kind: output, shape index: {}]
  %s15 = sld [smem:[#allocation0]]
  $region121: #{tpu_custom_call.1} parent=0
    _
  %s17 = ssub.s32 1, %s15
  %s18 = scalar_select 0, %s17, %s15
  $region1: #{tpu_custom_call.1} parent=0
    #allocation3 [shape = 'u8[65536]{0}', space=vmem, size = 0x10000, scoped, tag = 'input window, operand 0']
    #allocation4 [shape = 's32[2]{0}', space=sflag, size = 0x8, scoped, tag = 'scoped memory for tpu_custom_call.1']
    #allocation5 [shape = 's32[2]{0}', space=sflag, size = 0x8, scoped, tag = 'scoped memory for tpu_custom_call.1']
    #allocation6 [shape = 'u8[65536]{0}', space=vmem, size = 0x10000, scoped, tag = 'input window, operand 1']
    #allocation7 [shape = 's32[2]{0}', space=sflag, size = 0x8, scoped, tag = 'scoped memory for tpu_custom_call.1']
    #allocation8 [shape = 'u8[65536]{0}', space=vmem, size = 0x10000, scoped, tag = 'input window, operand 2, single buffered']
    #allocation9 [shape = 'u8[32768]{0}', space=vmem, size = 0x8000, scoped, tag = 'input window, operand 4, single buffered']
    #allocation10 [shape = 's32[1]{0}', space=sflag, size = 0x4, scoped, tag = 'scoped memory for tpu_custom_call.1']
    #allocation11 [shape = 'u8[512]{0}', space=vmem, size = 0x400, scoped, tag = 'input window, operand 5, single buffered']
    #allocation12 [shape = 'u8[131072]{0}', space=vmem, size = 0x20000, scoped, tag = 'input window, operand 8, single buffered']
    #allocation13 [shape = 's32[1]{0}', space=sflag, size = 0x4, scoped, tag = 'scoped memory for tpu_custom_call.1']
    #allocation14 [shape = 'u8[65536]{0}', space=vmem, size = 0x10000, scoped, tag = 'input window, operand 10, single buffered']
    #allocation15 [shape = 'u8[512]{0}', space=vmem, size = 0x400, scoped, tag = 'input window, operand 11, single buffered']
    #allocation16 [shape = 's32[1]{0}', space=sflag, size = 0x4, scoped, tag = 'scoped memory for tpu_custom_call.1']
    #allocation17 [shape = 'u8[262144]{0}', space=vmem, size = 0x40000, scoped, tag = 'output window, operand 0']
    %19 = vsyncpa [#allocation4], 0
    %s20 = scalar_lea.sflag [#allocation4], 1
    %21 = vsyncpa %s20, 0
    %22 = vsyncpa [#allocation7], 0
    %s23 = scalar_lea.sflag [#allocation7], 1
    %24 = vsyncpa %s23, 0
    %25 = vsyncpa [#allocation10], 0
    %26 = vsyncpa [#allocation13], 0
    %27 = vsyncpa [#allocation16], 0
    %28 = vsyncpa [#allocation5], 0
    %s29 = scalar_lea.sflag [#allocation5], 1
    %30 = vsyncpa %s29, 0
    loop: start=0, step=1, limit=6
    $region2: #{tpu_custom_call.1} parent=1 // loop_pre_header
      _
    $region3: #{tpu_custom_call.1} parent=1 // loop_header
      %s32 = sphi 0, %s36
      %p33 = scmp.ge.s32.totalorder %s32, 6
      %s42 = sphi 0, %s44
      %s45 = sphi 0, %s42
      %s46 = sphi 0, %s45
      %s62 = sphi 0, %s46
      %s68 = sphi 0, %s70
      %s71 = sphi 0, %s68
      %s72 = sphi 0, %s71
      %s88 = sphi 0, %s72
      %s92 = sphi 0, %s92
      %s94 = sphi 0, %s92
      %s95 = sphi 0, %s94
      %s109 = sphi 0, %s95
      %s113 = sphi 0, %s113
      %s115 = sphi 0, %s113
      %s116 = sphi 0, %s115
      %s130 = sphi 0, %s116
      %s134 = sphi 0, %s134
      %s136 = sphi 0, %s134
      %s137 = sphi 0, %s136
      %s151 = sphi 0, %s137
      %s155 = sphi 0, %s155
      %s157 = sphi 0, %s155
      %s158 = sphi 0, %s157
      %s172 = sphi 0, %s158
      %s176 = sphi 0, %s176
      %s178 = sphi 0, %s176
      %s179 = sphi 0, %s178
      %s193 = sphi 0, %s179
      %s197 = sphi 0, %s197
      %s199 = sphi 0, %s197
      %s200 = sphi 0, %s199
      %s214 = sphi 0, %s200
      %s218 = sphi 0, %s218
      %s220 = sphi 0, %s218
      %s221 = sphi 0, %s220
      %s235 = sphi 0, %s221
      %s239 = sphi 0, %s239
      %s241 = sphi 0, %s239
      %s242 = sphi 0, %s241
      %s256 = sphi 0, %s242
      %s260 = sphi 0, %s260
      %s262 = sphi 0, %s260
      %s263 = sphi 0, %s262
      %s277 = sphi 0, %s263
      %s281 = sphi 0, %s281
      %s283 = sphi 0, %s281
      %s284 = sphi 0, %s283
      %s298 = sphi 0, %s284
      %s302 = sphi 0, %s302
      %s304 = sphi 0, %s302
      %s305 = sphi 0, %s304
      %s319 = sphi 0, %s305
      %s323 = sphi 0, %s323
      %s325 = sphi 0, %s323
      %s326 = sphi 0, %s325
      %s340 = sphi 0, %s326
      %s346 = sphi 0, %s348
      %s349 = sphi 0, %s346
      %s350 = sphi 0, %s349
      %s366 = sphi 0, %s350
    $region4: #{tpu_custom_call.1} parent=1 // loop_header_branch
      %35 = sbr.rel (%p33) target = $region8
    $region5: #{tpu_custom_call.1} parent=1 // loop_body
      %s37 = ssub.s32 %s32, 1
      %s38 = ssub.s32 %s32, 2
      %s39 = sadd.s32 %s32, 1
      %s40 = ssub.s32 %s32, %s39
      %p41 = scmp.eq.s32.totalorder %s40, 0
      %s43 = sadd.s32 %s42, 1
      %s44 = scalar_select %p41, %s42, %s43
      %p47 = pneg %p41
      %p48 = scmp.eq.s32.totalorder %s32, 3
      %p49 = por %p47, %p48
      %p50 = scmp.ne.s32.totalorder %s42, %s45
      %p51 = scmp.eq.s32.totalorder %s32, 0
      %p52 = por %p50, %p51
      %p53 = scmp.ne.s32.totalorder %s42, %s45
      %p54 = scmp.eq.s32.totalorder %s37, 3
      %p55 = por %p53, %p54
      %p56 = scmp.ne.s32.totalorder %s45, %s46
      %p57 = scmp.eq.s32.totalorder %s37, 0
      %p58 = por %p56, %p57
      %p59 = scmp.ne.s32.totalorder %s45, %s46
      %p60 = scmp.eq.s32.totalorder %s38, 3
      %p61 = por %p59, %p60
      %p63 = scmp.ne.s32.totalorder %s46, %s62
      %p64 = scmp.eq.s32.totalorder %s38, 0
      %p65 = por %p63, %p64
      %s66 = ssub.s32 %s32, %s39
      %p67 = scmp.eq.s32.totalorder %s66, 0
      %s69 = sadd.s32 %s68, 1
      %s70 = scalar_select %p67, %s68, %s69
      %p73 = pneg %p67
      %p74 = scmp.eq.s32.totalorder %s32, 3
      %p75 = por %p73, %p74
      %p76 = scmp.ne.s32.totalorder %s68, %s71
      %p77 = scmp.eq.s32.totalorder %s32, 0
      %p78 = por %p76, %p77
      %p79 = scmp.ne.s32.totalorder %s68, %s71
      %p80 = scmp.eq.s32.totalorder %s37, 3
      %p81 = por %p79, %p80
      %p82 = scmp.ne.s32.totalorder %s71, %s72
      %p83 = scmp.eq.s32.totalorder %s37, 0
      %p84 = por %p82, %p83
      %p85 = scmp.ne.s32.totalorder %s71, %s72
      %p86 = scmp.eq.s32.totalorder %s38, 3
      %p87 = por %p85, %p86
      %p89 = scmp.ne.s32.totalorder %s72, %s88
      %p90 = scmp.eq.s32.totalorder %s38, 0
      %p91 = por %p89, %p90
      %s93 = sadd.s32 %s92, 1
      %p96 = scmp.eq.s32.totalorder %s32, 3
      %p97 = scmp.ne.s32.totalorder %s92, %s94
      %p98 = scmp.eq.s32.totalorder %s32, 0
      %p99 = por %p97, %p98
      %p100 = scmp.ne.s32.totalorder %s92, %s94
      %p101 = scmp.eq.s32.totalorder %s37, 3
      %p102 = por %p100, %p101
      %p103 = scmp.ne.s32.totalorder %s94, %s95
      %p104 = scmp.eq.s32.totalorder %s37, 0
      %p105 = por %p103, %p104
      %p106 = scmp.ne.s32.totalorder %s94, %s95
      %p107 = scmp.eq.s32.totalorder %s38, 3
      %p108 = por %p106, %p107
      %p110 = scmp.ne.s32.totalorder %s95, %s109
      %p111 = scmp.eq.s32.totalorder %s38, 0
      %p112 = por %p110, %p111
      %s114 = sadd.s32 %s113, 1
      %p117 = scmp.eq.s32.totalorder %s32, 3
      %p118 = scmp.ne.s32.totalorder %s113, %s115
      %p119 = scmp.eq.s32.totalorder %s32, 0
      %p120 = por %p118, %p119
      %p121 = scmp.ne.s32.totalorder %s113, %s115
      %p122 = scmp.eq.s32.totalorder %s37, 3
      %p123 = por %p121, %p122
      %p124 = scmp.ne.s32.totalorder %s115, %s116
      %p125 = scmp.eq.s32.totalorder %s37, 0
      %p126 = por %p124, %p125
      %p127 = scmp.ne.s32.totalorder %s115, %s116
      %p128 = scmp.eq.s32.totalorder %s38, 3
      %p129 = por %p127, %p128
      %p131 = scmp.ne.s32.totalorder %s116, %s130
      %p132 = scmp.eq.s32.totalorder %s38, 0
      %p133 = por %p131, %p132
      %s135 = sadd.s32 %s134, 1
      %p138 = scmp.eq.s32.totalorder %s32, 3
      %p139 = scmp.ne.s32.totalorder %s134, %s136
      %p140 = scmp.eq.s32.totalorder %s32, 0
      %p141 = por %p139, %p140
      %p142 = scmp.ne.s32.totalorder %s134, %s136
      %p143 = scmp.eq.s32.totalorder %s37, 3
      %p144 = por %p142, %p143
      %p145 = scmp.ne.s32.totalorder %s136, %s137
      %p146 = scmp.eq.s32.totalorder %s37, 0
      %p147 = por %p145, %p146
      %p148 = scmp.ne.s32.totalorder %s136, %s137
      %p149 = scmp.eq.s32.totalorder %s38, 3
      %p150 = por %p148, %p149
      %p152 = scmp.ne.s32.totalorder %s137, %s151
      %p153 = scmp.eq.s32.totalorder %s38, 0
      %p154 = por %p152, %p153
      %s156 = sadd.s32 %s155, 1
      %p159 = scmp.eq.s32.totalorder %s32, 3
      %p160 = scmp.ne.s32.totalorder %s155, %s157
      %p161 = scmp.eq.s32.totalorder %s32, 0
      %p162 = por %p160, %p161
      %p163 = scmp.ne.s32.totalorder %s155, %s157
      %p164 = scmp.eq.s32.totalorder %s37, 3
      %p165 = por %p163, %p164
      %p166 = scmp.ne.s32.totalorder %s157, %s158
      %p167 = scmp.eq.s32.totalorder %s37, 0
      %p168 = por %p166, %p167
      %p169 = scmp.ne.s32.totalorder %s157, %s158
      %p170 = scmp.eq.s32.totalorder %s38, 3
      %p171 = por %p169, %p170
      %p173 = scmp.ne.s32.totalorder %s158, %s172
      %p174 = scmp.eq.s32.totalorder %s38, 0
      %p175 = por %p173, %p174
      %s177 = sadd.s32 %s176, 1
      %p180 = scmp.eq.s32.totalorder %s32, 3
      %p181 = scmp.ne.s32.totalorder %s176, %s178
      %p182 = scmp.eq.s32.totalorder %s32, 0
      %p183 = por %p181, %p182
      %p184 = scmp.ne.s32.totalorder %s176, %s178
      %p185 = scmp.eq.s32.totalorder %s37, 3
      %p186 = por %p184, %p185
      %p187 = scmp.ne.s32.totalorder %s178, %s179
      %p188 = scmp.eq.s32.totalorder %s37, 0
      %p189 = por %p187, %p188
      %p190 = scmp.ne.s32.totalorder %s178, %s179
      %p191 = scmp.eq.s32.totalorder %s38, 3
      %p192 = por %p190, %p191
      %p194 = scmp.ne.s32.totalorder %s179, %s193
      %p195 = scmp.eq.s32.totalorder %s38, 0
      %p196 = por %p194, %p195
      %s198 = sadd.s32 %s197, 1
      %p201 = scmp.eq.s32.totalorder %s32, 3
      %p202 = scmp.ne.s32.totalorder %s197, %s199
      %p203 = scmp.eq.s32.totalorder %s32, 0
      %p204 = por %p202, %p203
      %p205 = scmp.ne.s32.totalorder %s197, %s199
      %p206 = scmp.eq.s32.totalorder %s37, 3
      %p207 = por %p205, %p206
      %p208 = scmp.ne.s32.totalorder %s199, %s200
      %p209 = scmp.eq.s32.totalorder %s37, 0
      %p210 = por %p208, %p209
      %p211 = scmp.ne.s32.totalorder %s199, %s200
      %p212 = scmp.eq.s32.totalorder %s38, 3
      %p213 = por %p211, %p212
      %p215 = scmp.ne.s32.totalorder %s200, %s214
      %p216 = scmp.eq.s32.totalorder %s38, 0
      %p217 = por %p215, %p216
      %s219 = sadd.s32 %s218, 1
      %p222 = scmp.eq.s32.totalorder %s32, 3
      %p223 = scmp.ne.s32.totalorder %s218, %s220
      %p224 = scmp.eq.s32.totalorder %s32, 0
      %p225 = por %p223, %p224
      %p226 = scmp.ne.s32.totalorder %s218, %s220
      %p227 = scmp.eq.s32.totalorder %s37, 3
      %p228 = por %p226, %p227
      %p229 = scmp.ne.s32.totalorder %s220, %s221
      %p230 = scmp.eq.s32.totalorder %s37, 0
      %p231 = por %p229, %p230
      %p232 = scmp.ne.s32.totalorder %s220, %s221
      %p233 = scmp.eq.s32.totalorder %s38, 3
      %p234 = por %p232, %p233
      %p236 = scmp.ne.s32.totalorder %s221, %s235
      %p237 = scmp.eq.s32.totalorder %s38, 0
      %p238 = por %p236, %p237
      %s240 = sadd.s32 %s239, 1
      %p243 = scmp.eq.s32.totalorder %s32, 3
      %p244 = scmp.ne.s32.totalorder %s239, %s241
      %p245 = scmp.eq.s32.totalorder %s32, 0
      %p246 = por %p244, %p245
      %p247 = scmp.ne.s32.totalorder %s239, %s241
      %p248 = scmp.eq.s32.totalorder %s37, 3
      %p249 = por %p247, %p248
      %p250 = scmp.ne.s32.totalorder %s241, %s242
      %p251 = scmp.eq.s32.totalorder %s37, 0
      %p252 = por %p250, %p251
      %p253 = scmp.ne.s32.totalorder %s241, %s242
      %p254 = scmp.eq.s32.totalorder %s38, 3
      %p255 = por %p253, %p254
      %p257 = scmp.ne.s32.totalorder %s242, %s256
      %p258 = scmp.eq.s32.totalorder %s38, 0
      %p259 = por %p257, %p258
      %s261 = sadd.s32 %s260, 1
      %p264 = scmp.eq.s32.totalorder %s32, 3
      %p265 = scmp.ne.s32.totalorder %s260, %s262
      %p266 = scmp.eq.s32.totalorder %s32, 0
      %p267 = por %p265, %p266
      %p268 = scmp.ne.s32.totalorder %s260, %s262
      %p269 = scmp.eq.s32.totalorder %s37, 3
      %p270 = por %p268, %p269
      %p271 = scmp.ne.s32.totalorder %s262, %s263
      %p272 = scmp.eq.s32.totalorder %s37, 0
      %p273 = por %p271, %p272
      %p274 = scmp.ne.s32.totalorder %s262, %s263
      %p275 = scmp.eq.s32.totalorder %s38, 3
      %p276 = por %p274, %p275
      %p278 = scmp.ne.s32.totalorder %s263, %s277
      %p279 = scmp.eq.s32.totalorder %s38, 0
      %p280 = por %p278, %p279
      %s282 = sadd.s32 %s281, 1
      %p285 = scmp.eq.s32.totalorder %s32, 3
      %p286 = scmp.ne.s32.totalorder %s281, %s283
      %p287 = scmp.eq.s32.totalorder %s32, 0
      %p288 = por %p286, %p287
      %p289 = scmp.ne.s32.totalorder %s281, %s283
      %p290 = scmp.eq.s32.totalorder %s37, 3
      %p291 = por %p289, %p290
      %p292 = scmp.ne.s32.totalorder %s283, %s284
      %p293 = scmp.eq.s32.totalorder %s37, 0
      %p294 = por %p292, %p293
      %p295 = scmp.ne.s32.totalorder %s283, %s284
      %p296 = scmp.eq.s32.totalorder %s38, 3
      %p297 = por %p295, %p296
      %p299 = scmp.ne.s32.totalorder %s284, %s298
      %p300 = scmp.eq.s32.totalorder %s38, 0
      %p301 = por %p299, %p300
      %s303 = sadd.s32 %s302, 1
      %p306 = scmp.eq.s32.totalorder %s32, 3
      %p307 = scmp.ne.s32.totalorder %s302, %s304
      %p308 = scmp.eq.s32.totalorder %s32, 0
      %p309 = por %p307, %p308
      %p310 = scmp.ne.s32.totalorder %s302, %s304
      %p311 = scmp.eq.s32.totalorder %s37, 3
      %p312 = por %p310, %p311
      %p313 = scmp.ne.s32.totalorder %s304, %s305
      %p314 = scmp.eq.s32.totalorder %s37, 0
      %p315 = por %p313, %p314
      %p316 = scmp.ne.s32.totalorder %s304, %s305
      %p317 = scmp.eq.s32.totalorder %s38, 3
      %p318 = por %p316, %p317
      %p320 = scmp.ne.s32.totalorder %s305, %s319
      %p321 = scmp.eq.s32.totalorder %s38, 0
      %p322 = por %p320, %p321
      %s324 = sadd.s32 %s323, 1
      %p327 = scmp.eq.s32.totalorder %s32, 3
      %p328 = scmp.ne.s32.totalorder %s323, %s325
      %p329 = scmp.eq.s32.totalorder %s32, 0
      %p330 = por %p328, %p329
      %p331 = scmp.ne.s32.totalorder %s323, %s325
      %p332 = scmp.eq.s32.totalorder %s37, 3
      %p333 = por %p331, %p332
      %p334 = scmp.ne.s32.totalorder %s325, %s326
      %p335 = scmp.eq.s32.totalorder %s37, 0
      %p336 = por %p334, %p335
      %p337 = scmp.ne.s32.totalorder %s325, %s326
      %p338 = scmp.eq.s32.totalorder %s38, 3
      %p339 = por %p337, %p338
      %p341 = scmp.ne.s32.totalorder %s326, %s340
      %p342 = scmp.eq.s32.totalorder %s38, 0
      %p343 = por %p341, %p342
      %s344 = ssub.s32 %s32, %s39
      %p345 = scmp.eq.s32.totalorder %s344, 0
      %s347 = sadd.s32 %s346, 1
      %s348 = scalar_select %p345, %s346, %s347
      %p351 = pneg %p345
      %p352 = scmp.eq.s32.totalorder %s32, 3
      %p353 = por %p351, %p352
      %p354 = scmp.ne.s32.totalorder %s346, %s349
      %p355 = scmp.eq.s32.totalorder %s32, 0
      %p356 = por %p354, %p355
      %p357 = scmp.ne.s32.totalorder %s346, %s349
      %p358 = scmp.eq.s32.totalorder %s37, 3
      %p359 = por %p357, %p358
      %p360 = scmp.ne.s32.totalorder %s349, %s350
      %p361 = scmp.eq.s32.totalorder %s37, 0
      %p362 = por %p360, %p361
      %p363 = scmp.ne.s32.totalorder %s349, %s350
      %p364 = scmp.eq.s32.totalorder %s38, 3
      %p365 = por %p363, %p364
      %p367 = scmp.ne.s32.totalorder %s350, %s366
      %p368 = scmp.eq.s32.totalorder %s38, 0
      %p369 = por %p367, %p368
      %p370 = scmp.le.s32.totalorder 1, %s32
      %p371 = scmp.lt.s32.totalorder %s32, 5
      %p372 = pnand %p370, %p371
      %p373 = pneg %p372
      // Predicated region
      $region9: #{tpu_custom_call.1} parent=5 // pred_check
        _
      $region10: #{tpu_custom_call.1} parent=5 // pred_check_branch
        %375 = sbr.rel (%p372) target = $region12
      $region11: #{tpu_custom_call.1} parent=5 // pred_region
        %s376 = ssub.s32 %s32, 1
        // Predicated region
        $region13: #{tpu_custom_call.1} parent=11 // pred_check
          %p377 = pneg %p105
        $region14: #{tpu_custom_call.1} parent=11 // pred_check_branch
          %379 = sbr.rel (%p377) target = $region16
        $region15: #{tpu_custom_call.1} parent=11 // pred_region
          %381 = vsyncadd [#allocation7], 0
          %s382 = sshll.u32 %s2, 4
          %s383 = int_to_ptr.hbm [resolvable:$true] %s382
          %s384 = sshll.u32 [#allocation8], 4
          %s385 = int_to_ptr.vmem [resolvable:$true] %s384
          %390 = dma.hbm_to_vmem [thread:$0]  %s383, 2048, %s385, [#allocation7], 128, 128, 8
        $region16: #{tpu_custom_call.1} parent=11 // pred_fallthru
          _
        // Predicated region
        $region17: #{tpu_custom_call.1} parent=11 // pred_check
          %p391 = pneg %p126
        $region18: #{tpu_custom_call.1} parent=11 // pred_check_branch
          %393 = sbr.rel (%p391) target = $region20
        $region19: #{tpu_custom_call.1} parent=11 // pred_region
          _
        $region20: #{tpu_custom_call.1} parent=11 // pred_fallthru
          _
        // Predicated region
        $region21: #{tpu_custom_call.1} parent=11 // pred_check
          %p394 = pneg %p147
        $region22: #{tpu_custom_call.1} parent=11 // pred_check_branch
          %396 = sbr.rel (%p394) target = $region24
        $region23: #{tpu_custom_call.1} parent=11 // pred_region
          %398 = vsyncadd [#allocation10], 0
          %s399 = sshll.u32 %s4, 4
          %s400 = int_to_ptr.hbm [resolvable:$true] %s399
          %s401 = sshll.u32 [#allocation9], 4
          %s402 = int_to_ptr.vmem [resolvable:$true] %s401
          %407 = dma.hbm_to_vmem [thread:$0]  %s400, 1024, %s402, [#allocation10], 64, 64, 4
        $region24: #{tpu_custom_call.1} parent=11 // pred_fallthru
          _
        // Predicated region
        $region25: #{tpu_custom_call.1} parent=11 // pred_check
          %p408 = pneg %p168
        $region26: #{tpu_custom_call.1} parent=11 // pred_check_branch
          %410 = sbr.rel (%p408) target = $region28
        $region27: #{tpu_custom_call.1} parent=11 // pred_region
          %412 = vsyncadd [#allocation10], 0
          %s414 = sshll.u32 %s5, 4
          %s415 = int_to_ptr.hbm [resolvable:$true] %s414
          %s416 = sshll.u32 [#allocation11], 4
          %s417 = int_to_ptr.vmem [resolvable:$true] %s416
          %419 = dma.hbm_to_vmem [thread:$0]  %s415, 16, %s417, [#allocation10]
        $region28: #{tpu_custom_call.1} parent=11 // pred_fallthru
          _
        // Predicated region
        $region29: #{tpu_custom_call.1} parent=11 // pred_check
          %p420 = pneg %p189
        $region30: #{tpu_custom_call.1} parent=11 // pred_check_branch
          %422 = sbr.rel (%p420) target = $region32
        $region31: #{tpu_custom_call.1} parent=11 // pred_region
          _
        $region32: #{tpu_custom_call.1} parent=11 // pred_fallthru
          _
        // Predicated region
        $region33: #{tpu_custom_call.1} parent=11 // pred_check
          %p423 = pneg %p210
        $region34: #{tpu_custom_call.1} parent=11 // pred_check_branch
          %425 = sbr.rel (%p423) target = $region36
        $region35: #{tpu_custom_call.1} parent=11 // pred_region
          _
        $region36: #{tpu_custom_call.1} parent=11 // pred_fallthru
          _
        // Predicated region
        $region37: #{tpu_custom_call.1} parent=11 // pred_check
          %p426 = pneg %p231
        $region38: #{tpu_custom_call.1} parent=11 // pred_check_branch
          %428 = sbr.rel (%p426) target = $region40
        $region39: #{tpu_custom_call.1} parent=11 // pred_region
          %430 = vsyncadd [#allocation13], 0
          %s431 = sshll.u32 %s8, 4
          %s432 = int_to_ptr.hbm [resolvable:$true] %s431
          %s433 = sshll.u32 [#allocation12], 4
          %s434 = int_to_ptr.vmem [resolvable:$true] %s433
          %439 = dma.hbm_to_vmem [thread:$0]  %s432, 4096, %s434, [#allocation13], 128, 128, 8
        $region40: #{tpu_custom_call.1} parent=11 // pred_fallthru
          _
        // Predicated region
        $region41: #{tpu_custom_call.1} parent=11 // pred_check
          %p440 = pneg %p252
        $region42: #{tpu_custom_call.1} parent=11 // pred_check_branch
          %442 = sbr.rel (%p440) target = $region44
        $region43: #{tpu_custom_call.1} parent=11 // pred_region
          _
        $region44: #{tpu_custom_call.1} parent=11 // pred_fallthru
          _
        // Predicated region
        $region45: #{tpu_custom_call.1} parent=11 // pred_check
          %p443 = pneg %p273
        $region46: #{tpu_custom_call.1} parent=11 // pred_check_branch
          %445 = sbr.rel (%p443) target = $region48
        $region47: #{tpu_custom_call.1} parent=11 // pred_region
          %447 = vsyncadd [#allocation13], 0
          %s448 = sshll.u32 %s10, 4
          %s449 = int_to_ptr.hbm [resolvable:$true] %s448
          %s450 = sshll.u32 [#allocation14], 4
          %s451 = int_to_ptr.vmem [resolvable:$true] %s450
          %456 = dma.hbm_to_vmem [thread:$0]  %s449, 2048, %s451, [#allocation13], 64, 64, 4
        $region48: #{tpu_custom_call.1} parent=11 // pred_fallthru
          _
        // Predicated region
        $region49: #{tpu_custom_call.1} parent=11 // pred_check
          %p457 = pneg %p294
        $region50: #{tpu_custom_call.1} parent=11 // pred_check_branch
          %459 = sbr.rel (%p457) target = $region52
        $region51: #{tpu_custom_call.1} parent=11 // pred_region
          %461 = vsyncadd [#allocation16], 0
          %s463 = sshll.u32 %s11, 4
          %s464 = int_to_ptr.hbm [resolvable:$true] %s463
          %s465 = sshll.u32 [#allocation15], 4
          %s466 = int_to_ptr.vmem [resolvable:$true] %s465
          %468 = dma.hbm_to_vmem [thread:$0]  %s464, 16, %s466, [#allocation16]
        $region52: #{tpu_custom_call.1} parent=11 // pred_fallthru
          _
        // Predicated region
        $region53: #{tpu_custom_call.1} parent=11 // pred_check
          %p469 = pneg %p315
        $region54: #{tpu_custom_call.1} parent=11 // pred_check_branch
          %471 = sbr.rel (%p469) target = $region56
        $region55: #{tpu_custom_call.1} parent=11 // pred_region
          _
        $region56: #{tpu_custom_call.1} parent=11 // pred_fallthru
          _
        // Predicated region
        $region57: #{tpu_custom_call.1} parent=11 // pred_check
          %p472 = pneg %p336
        $region58: #{tpu_custom_call.1} parent=11 // pred_check_branch
          %474 = sbr.rel (%p472) target = $region60
        $region59: #{tpu_custom_call.1} parent=11 // pred_region
          _
        $region60: #{tpu_custom_call.1} parent=11 // pred_fallthru
          _
      $region12: #{tpu_custom_call.1} parent=5 // pred_fallthru
        _
      %p475 = scmp.lt.s32.totalorder %s32, 4
      // Predicated region
      $region61: #{tpu_custom_call.1} parent=5 // pred_check
        %p476 = pneg %p475
      $region62: #{tpu_custom_call.1} parent=5 // pred_check_branch
        %478 = sbr.rel (%p476) target = $region64
      $region63: #{tpu_custom_call.1} parent=5 // pred_region
        // Predicated region
        $region65: #{tpu_custom_call.1} parent=63 // pred_check
          %p479 = pneg %p52
        $region66: #{tpu_custom_call.1} parent=63 // pred_check_branch
          %481 = sbr.rel (%p479) target = $region68
        $region67: #{tpu_custom_call.1} parent=63 // pred_region
          %s482 = sand.u32 %s42, 1
          %s483 = scalar_lea.sflag [#allocation4], %s482
          %s484 = sand.u32 %s42, 1
          %s485 = smul.addr %s484, 64
          %s486 = scalar_lea.vmem [#allocation3], %s485
          %488 = vsyncadd %s483, 0
          %s489 = smul.addr %s32, 16
          %s490 = smul.addr %s489, 4
          %s491 = scalar_lea.hbm %s0, %s490
          %s492 = sshll.u32 %s491, 4
          %s493 = int_to_ptr.hbm [resolvable:$true] %s492
          %s494 = sshll.u32 %s486, 4
          %s495 = int_to_ptr.vmem [resolvable:$true] %s494
          %500 = dma.hbm_to_vmem [thread:$0]  %s493, 1024, %s495, %s483, 64, 64, 4
        $region68: #{tpu_custom_call.1} parent=63 // pred_fallthru
          _
        // Predicated region
        $region69: #{tpu_custom_call.1} parent=63 // pred_check
          %p501 = pneg %p78
        $region70: #{tpu_custom_call.1} parent=63 // pred_check_branch
          %503 = sbr.rel (%p501) target = $region72
        $region71: #{tpu_custom_call.1} parent=63 // pred_region
          %s504 = sand.u32 %s32, 1
          %s505 = scalar_lea.sflag [#allocation7], %s504
          %s506 = sand.u32 %s68, 1
          %s507 = smul.addr %s506, 64
          %s508 = scalar_lea.vmem [#allocation6], %s507
          %510 = vsyncadd %s505, 0
          %s511 = smul.addr %s32, 16
          %s512 = smul.addr %s511, 4
          %s513 = scalar_lea.hbm %s1, %s512
          %s514 = sshll.u32 %s513, 4
          %s515 = int_to_ptr.hbm [resolvable:$true] %s514
          %s516 = sshll.u32 %s508, 4
          %s517 = int_to_ptr.vmem [resolvable:$true] %s516
          %522 = dma.hbm_to_vmem [thread:$0]  %s515, 1024, %s517, %s505, 64, 64, 4
        $region72: #{tpu_custom_call.1} parent=63 // pred_fallthru
          _
      $region64: #{tpu_custom_call.1} parent=5 // pred_fallthru
        _
      %p523 = scmp.le.s32.totalorder 1, %s32
      %p524 = scmp.lt.s32.totalorder %s32, 5
      %p525 = pnand %p523, %p524
      %p526 = pneg %p525
      // Predicated region
      $region73: #{tpu_custom_call.1} parent=5 // pred_check
        _
      $region74: #{tpu_custom_call.1} parent=5 // pred_check_branch
        %528 = sbr.rel (%p525) target = $region76
      $region75: #{tpu_custom_call.1} parent=5 // pred_region
        %s529 = ssub.s32 %s32, 1
        %s530 = sand.u32 %s45, 1
        %s531 = scalar_lea.sflag [#allocation4], %s530
        %s532 = sand.u32 %s45, 1
        %s533 = smul.addr %s532, 64
        %s534 = scalar_lea.vmem [#allocation3], %s533
        // Predicated region
        $region77: #{tpu_custom_call.1} parent=75 // pred_check
          %p535 = pneg %p58
        $region78: #{tpu_custom_call.1} parent=75 // pred_check_branch
          %537 = sbr.rel (%p535) target = $region80
        $region79: #{tpu_custom_call.1} parent=75 // pred_region
          %539 = dma.done %s531, 1024
        $region80: #{tpu_custom_call.1} parent=75 // pred_fallthru
          _
        %s540 = sand.u32 %s37, 1
        %s541 = scalar_lea.sflag [#allocation7], %s540
        %s542 = sand.u32 %s71, 1
        %s543 = smul.addr %s542, 64
        %s544 = scalar_lea.vmem [#allocation6], %s543
        // Predicated region
        $region81: #{tpu_custom_call.1} parent=75 // pred_check
          %p545 = pneg %p84
        $region82: #{tpu_custom_call.1} parent=75 // pred_check_branch
          %547 = sbr.rel (%p545) target = $region84
        $region83: #{tpu_custom_call.1} parent=75 // pred_region
          %549 = dma.done %s541, 1024
        $region84: #{tpu_custom_call.1} parent=75 // pred_fallthru
          _
        // Predicated region
        $region85: #{tpu_custom_call.1} parent=75 // pred_check
          %p550 = pneg %p105
        $region86: #{tpu_custom_call.1} parent=75 // pred_check_branch
          %552 = sbr.rel (%p550) target = $region88
        $region87: #{tpu_custom_call.1} parent=75 // pred_region
          %554 = dma.done [#allocation7], 2048
        $region88: #{tpu_custom_call.1} parent=75 // pred_fallthru
          _
        // Predicated region
        $region89: #{tpu_custom_call.1} parent=75 // pred_check
          %p555 = pneg %p147
        $region90: #{tpu_custom_call.1} parent=75 // pred_check_branch
          %557 = sbr.rel (%p555) target = $region92
        $region91: #{tpu_custom_call.1} parent=75 // pred_region
          %559 = dma.done [#allocation10], 1024
        $region92: #{tpu_custom_call.1} parent=75 // pred_fallthru
          _
        // Predicated region
        $region93: #{tpu_custom_call.1} parent=75 // pred_check
          %p560 = pneg %p168
        $region94: #{tpu_custom_call.1} parent=75 // pred_check_branch
          %562 = sbr.rel (%p560) target = $region96
        $region95: #{tpu_custom_call.1} parent=75 // pred_region
          %564 = dma.done [#allocation10], 16
        $region96: #{tpu_custom_call.1} parent=75 // pred_fallthru
          _
        // Predicated region
        $region97: #{tpu_custom_call.1} parent=75 // pred_check
          %p565 = pneg %p231
        $region98: #{tpu_custom_call.1} parent=75 // pred_check_branch
          %567 = sbr.rel (%p565) target = $region100
        $region99: #{tpu_custom_call.1} parent=75 // pred_region
          %569 = dma.done [#allocation13], 4096
        $region100: #{tpu_custom_call.1} parent=75 // pred_fallthru
          _
        // Predicated region
        $region101: #{tpu_custom_call.1} parent=75 // pred_check
          %p570 = pneg %p273
        $region102: #{tpu_custom_call.1} parent=75 // pred_check_branch
          %572 = sbr.rel (%p570) target = $region104
        $region103: #{tpu_custom_call.1} parent=75 // pred_region
          %574 = dma.done [#allocation13], 2048
        $region104: #{tpu_custom_call.1} parent=75 // pred_fallthru
          _
        // Predicated region
        $region105: #{tpu_custom_call.1} parent=75 // pred_check
          %p575 = pneg %p294
        $region106: #{tpu_custom_call.1} parent=75 // pred_check_branch
          %577 = sbr.rel (%p575) target = $region108
        $region107: #{tpu_custom_call.1} parent=75 // pred_region
          %579 = dma.done [#allocation16], 16
        $region108: #{tpu_custom_call.1} parent=75 // pred_fallthru
          _
        %s580 = sand.u32 %s45, 1
        %s581 = scalar_lea.sflag [#allocation4], %s580
        %s582 = sand.u32 %s45, 1
        %s583 = smul.addr %s582, 64
        %s584 = scalar_lea.vmem [#allocation3], %s583
        %p585 = pneg %p58
        %p586 = pneg %p55
        %s587 = sand.u32 %s37, 1
        %s588 = scalar_lea.sflag [#allocation7], %s587
        %s589 = sand.u32 %s71, 1
        %s590 = smul.addr %s589, 64
        %s591 = scalar_lea.vmem [#allocation6], %s590
        %p592 = pneg %p84
        %p593 = pneg %p81
        %p594 = pneg %p105
        %p595 = pneg %p102
        %p596 = pneg %p126
        %p597 = pneg %p123
        %p598 = pneg %p147
        %p599 = pneg %p144
        %p600 = pneg %p168
        %p601 = pneg %p165
        %p602 = pneg %p189
        %p603 = pneg %p186
        %p604 = pneg %p210
        %p605 = pneg %p207
        %p606 = pneg %p231
        %p607 = pneg %p228
        %p608 = pneg %p252
        %p609 = pneg %p249
        %p610 = pneg %p273
        %p611 = pneg %p270
        %p612 = pneg %p294
        %p613 = pneg %p291
        %p614 = pneg %p315
        %p615 = pneg %p312
        %p616 = pneg %p336
        %p617 = pneg %p333
        %p618 = pneg %p362
        %p619 = pneg %p359
        %s620 = sand.u32 %s349, 1
        %s621 = scalar_lea.sflag [#allocation5], %s620
        %s622 = sand.u32 %s349, 1
        %s623 = smul.addr %s622, 256
        %s624 = scalar_lea.vmem [#allocation17], %s623
        %v625 = vld [vmem:[%s544] sm:$0xf]
        %v626 = vld [vmem:[%s544 + $0x4] sm:$0xf]
        %v627 = vld [vmem:[%s544 + $0x8] sm:$0xf]
        %v628 = vld [vmem:[%s544 + $0xc] sm:$0xf]
        %v629 = vld [vmem:[%s544 + $0x10] sm:$0xf]
        %v630 = vld [vmem:[%s544 + $0x14] sm:$0xf]
        %v631 = vld [vmem:[%s544 + $0x18] sm:$0xf]
        %v632 = vld [vmem:[%s544 + $0x1c] sm:$0xf]
        %v633 = vld [vmem:[%s544 + $0x20] sm:$0xf]
        %v634 = vld [vmem:[%s544 + $0x24] sm:$0xf]
        %v635 = vld [vmem:[%s544 + $0x28] sm:$0xf]
        %v636 = vld [vmem:[%s544 + $0x2c] sm:$0xf]
        %v637 = vld [vmem:[%s544 + $0x30] sm:$0xf]
        %v638 = vld [vmem:[%s544 + $0x34] sm:$0xf]
        %v639 = vld [vmem:[%s544 + $0x38] sm:$0xf]
        %v640 = vld [vmem:[%s544 + $0x3c] sm:$0xf]
        %v641 = vld [vmem:[%s534] sm:$0xf]
        %v642 = vld [vmem:[%s534 + $0x4] sm:$0xf]
        %v643 = vld [vmem:[%s534 + $0x8] sm:$0xf]
        %v644 = vld [vmem:[%s534 + $0xc] sm:$0xf]
        %v645 = vld [vmem:[%s534 + $0x10] sm:$0xf]
        %v646 = vld [vmem:[%s534 + $0x14] sm:$0xf]
        %v647 = vld [vmem:[%s534 + $0x18] sm:$0xf]
        %v648 = vld [vmem:[%s534 + $0x1c] sm:$0xf]
        %v649 = vld [vmem:[%s534 + $0x20] sm:$0xf]
        %v650 = vld [vmem:[%s534 + $0x24] sm:$0xf]
        %v651 = vld [vmem:[%s534 + $0x28] sm:$0xf]
        %v652 = vld [vmem:[%s534 + $0x2c] sm:$0xf]
        %v653 = vld [vmem:[%s534 + $0x30] sm:$0xf]
        %v654 = vld [vmem:[%s534 + $0x34] sm:$0xf]
        %v655 = vld [vmem:[%s534 + $0x38] sm:$0xf]
        %v656 = vld [vmem:[%s534 + $0x3c] sm:$0xf]
        %v673 = vunpack.c.l.b16 %v625
        %v674 = vunpack.c.l.b16 %v626
        %v675 = vunpack.c.l.b16 %v627
        %v676 = vunpack.c.l.b16 %v628
        %v677 = vunpack.c.l.b16 %v629
        %v678 = vunpack.c.l.b16 %v630
        %v679 = vunpack.c.l.b16 %v631
        %v680 = vunpack.c.l.b16 %v632
        %v681 = vunpack.c.l.b16 %v633
        %v682 = vunpack.c.l.b16 %v634
        %v683 = vunpack.c.l.b16 %v635
        %v684 = vunpack.c.l.b16 %v636
        %v685 = vunpack.c.l.b16 %v637
        %v686 = vunpack.c.l.b16 %v638
        %v687 = vunpack.c.l.b16 %v639
        %v688 = vunpack.c.l.b16 %v640
        %v689 = vpack.c.b16 %v674, %v673
        %v690 = vpack.c.b16 %v676, %v675
        %v691 = vpack.c.b16 %v678, %v677
        %v692 = vpack.c.b16 %v680, %v679
        %v693 = vpack.c.b16 %v682, %v681
        %v694 = vpack.c.b16 %v684, %v683
        %v695 = vpack.c.b16 %v686, %v685
        %v696 = vpack.c.b16 %v688, %v687
        %v721 = vunpack.c.l.b16 %v641
        %v722 = vunpack.c.l.b16 %v642
        %v723 = vunpack.c.l.b16 %v643
        %v724 = vunpack.c.l.b16 %v644
        %v725 = vunpack.c.l.b16 %v645
        %v726 = vunpack.c.l.b16 %v646
        %v727 = vunpack.c.l.b16 %v647
        %v728 = vunpack.c.l.b16 %v648
        %v729 = vunpack.c.l.b16 %v649
        %v730 = vunpack.c.l.b16 %v650
        %v731 = vunpack.c.l.b16 %v651
        %v732 = vunpack.c.l.b16 %v652
        %v733 = vunpack.c.l.b16 %v653
        %v734 = vunpack.c.l.b16 %v654
        %v735 = vunpack.c.l.b16 %v655
        %v736 = vunpack.c.l.b16 %v656
        %v737 = vpack.c.b16 %v722, %v721
        %v738 = vpack.c.b16 %v724, %v723
        %v739 = vpack.c.b16 %v726, %v725
        %v740 = vpack.c.b16 %v728, %v727
        %v741 = vpack.c.b16 %v730, %v729
        %v742 = vpack.c.b16 %v732, %v731
        %v743 = vpack.c.b16 %v734, %v733
        %v744 = vpack.c.b16 %v736, %v735
        %753 = vmatpush.bf16.msra.mxu0 %v744
        %754 = vmatpush.bf16.msra.mxu0 %v743
        %755 = vmatpush.bf16.msra.mxu0 %v742
        %756 = vmatpush.bf16.msra.mxu0 %v741
        %757 = vmatpush.bf16.msra.mxu0 %v740
        %758 = vmatpush.bf16.msra.mxu0 %v739
        %759 = vmatpush.bf16.msra.mxu0 %v738
        %760 = vmatpush.bf16.msra.mxu0 %v737
        %761 = vmatmul.bf16.gmra.mxu0 %v689
        %v762 = vpop.f32.mrf.mxu0
        %v763 = vadd.f32 0.0, %v762
        %v764 = vpop.f32.mrf.mxu0
        %v765 = vadd.f32 0.0, %v764
        %766 = vmatmul.bf16.gmra.mxu0 %v690
        %v767 = vpop.f32.mrf.mxu0
        %v768 = vadd.f32 0.0, %v767
        %v769 = vpop.f32.mrf.mxu0
        %v770 = vadd.f32 0.0, %v769
        %771 = vmatmul.bf16.gmra.mxu0 %v691
        %v772 = vpop.f32.mrf.mxu0
        %v773 = vadd.f32 0.0, %v772
        %v774 = vpop.f32.mrf.mxu0
        %v775 = vadd.f32 0.0, %v774
        %776 = vmatmul.bf16.gmra.mxu0 %v692
        %v777 = vpop.f32.mrf.mxu0
        %v778 = vadd.f32 0.0, %v777
        %v779 = vpop.f32.mrf.mxu0
        %v780 = vadd.f32 0.0, %v779
        %781 = vmatmul.bf16.gmra.mxu0 %v693
        %v782 = vpop.f32.mrf.mxu0
        %v783 = vadd.f32 0.0, %v782
        %v784 = vpop.f32.mrf.mxu0
        %v785 = vadd.f32 0.0, %v784
        %786 = vmatmul.bf16.gmra.mxu0 %v694
        %v787 = vpop.f32.mrf.mxu0
        %v788 = vadd.f32 0.0, %v787
        %v789 = vpop.f32.mrf.mxu0
        %v790 = vadd.f32 0.0, %v789
        %791 = vmatmul.bf16.gmra.mxu0 %v695
        %v792 = vpop.f32.mrf.mxu0
        %v793 = vadd.f32 0.0, %v792
        %v794 = vpop.f32.mrf.mxu0
        %v795 = vadd.f32 0.0, %v794
        %796 = vmatmul.bf16.gmra.mxu0 %v696
        %v797 = vpop.f32.mrf.mxu0
        %v798 = vadd.f32 0.0, %v797
        %v799 = vpop.f32.mrf.mxu0
        %v800 = vadd.f32 0.0, %v799
        %801 = vdwg.mxu0
        %v802 = vld [vmem:[#allocation8] sm:$0xff]
        %v803 = vld [vmem:[#allocation8 + $0x8] sm:$0xff]
        %v804 = vld [vmem:[#allocation8 + $0x10] sm:$0xff]
        %v805 = vld [vmem:[#allocation8 + $0x18] sm:$0xff]
        %v806 = vld [vmem:[#allocation8 + $0x20] sm:$0xff]
        %v807 = vld [vmem:[#allocation8 + $0x28] sm:$0xff]
        %v808 = vld [vmem:[#allocation8 + $0x30] sm:$0xff]
        %v809 = vld [vmem:[#allocation8 + $0x38] sm:$0xff]
        %v810 = vld [vmem:[#allocation8 + $0x40] sm:$0xff]
        %v811 = vld [vmem:[#allocation8 + $0x48] sm:$0xff]
        %v812 = vld [vmem:[#allocation8 + $0x50] sm:$0xff]
        %v813 = vld [vmem:[#allocation8 + $0x58] sm:$0xff]
        %v814 = vld [vmem:[#allocation8 + $0x60] sm:$0xff]
        %v815 = vld [vmem:[#allocation8 + $0x68] sm:$0xff]
        %v816 = vld [vmem:[#allocation8 + $0x70] sm:$0xff]
        %v817 = vld [vmem:[#allocation8 + $0x78] sm:$0xff]
        %v818 = vld [vmem:[%s3] sm:$0x3]
        %v820 = vperm.slane %v818, 0
        %v821 = vperm.slane %v818, 1
        %v840 = vunpack.c.l.b16 %v802
        %v841 = vunpack.c.h.b16 %v802
        %v842 = vunpack.c.l.b16 %v803
        %v843 = vunpack.c.h.b16 %v803
        %v844 = vunpack.c.l.b16 %v804
        %v845 = vunpack.c.h.b16 %v804
        %v846 = vunpack.c.l.b16 %v805
        %v847 = vunpack.c.h.b16 %v805
        %v848 = vunpack.c.l.b16 %v806
        %v849 = vunpack.c.h.b16 %v806
        %v850 = vunpack.c.l.b16 %v807
        %v851 = vunpack.c.h.b16 %v807
        %v852 = vunpack.c.l.b16 %v808
        %v853 = vunpack.c.h.b16 %v808
        %v854 = vunpack.c.l.b16 %v809
        %v855 = vunpack.c.h.b16 %v809
        %v856 = vunpack.c.l.b16 %v810
        %v857 = vunpack.c.h.b16 %v810
        %v858 = vunpack.c.l.b16 %v811
        %v859 = vunpack.c.h.b16 %v811
        %v860 = vunpack.c.l.b16 %v812
        %v861 = vunpack.c.h.b16 %v812
        %v862 = vunpack.c.l.b16 %v813
        %v863 = vunpack.c.h.b16 %v813
        %v864 = vunpack.c.l.b16 %v814
        %v865 = vunpack.c.h.b16 %v814
        %v866 = vunpack.c.l.b16 %v815
        %v867 = vunpack.c.h.b16 %v815
        %v868 = vunpack.c.l.b16 %v816
        %v869 = vunpack.c.h.b16 %v816
        %v870 = vunpack.c.l.b16 %v817
        %v871 = vunpack.c.h.b16 %v817
        %v872 = vpack.c.b16 %v842, %v840
        %v873 = vpack.c.b16 %v843, %v841
        %v874 = vpack.c.b16 %v846, %v844
        %v875 = vpack.c.b16 %v847, %v845
        %v876 = vpack.c.b16 %v850, %v848
        %v877 = vpack.c.b16 %v851, %v849
        %v878 = vpack.c.b16 %v854, %v852
        %v879 = vpack.c.b16 %v855, %v853
        %v880 = vpack.c.b16 %v858, %v856
        %v881 = vpack.c.b16 %v859, %v857
        %v882 = vpack.c.b16 %v862, %v860
        %v883 = vpack.c.b16 %v863, %v861
        %v884 = vpack.c.b16 %v866, %v864
        %v885 = vpack.c.b16 %v867, %v865
        %v886 = vpack.c.b16 %v870, %v868
        %v887 = vpack.c.b16 %v871, %v869
        %904 = vmatpush.bf16.msra.mxu0 %v886
        %905 = vmatpush.bf16.msra.mxu0 %v884
        %906 = vmatpush.bf16.msra.mxu0 %v882
        %907 = vmatpush.bf16.msra.mxu0 %v880
        %908 = vmatpush.bf16.msra.mxu0 %v878
        %909 = vmatpush.bf16.msra.mxu0 %v876
        %910 = vmatpush.bf16.msra.mxu0 %v874
        %911 = vmatpush.bf16.msra.mxu0 %v872
        %912 = vmatmul.bf16.gmra.mxu0 %v737
        %v913 = vpop.f32.mrf.mxu0
        %v914 = vadd.f32 %v820, %v913
        %v915 = vpop.f32.mrf.mxu0
        %v916 = vadd.f32 %v820, %v915
        %917 = vmatmul.bf16.gmra.mxu0 %v738
        %v918 = vpop.f32.mrf.mxu0
        %v919 = vadd.f32 %v820, %v918
        %v920 = vpop.f32.mrf.mxu0
        %v921 = vadd.f32 %v820, %v920
        %922 = vmatmul.bf16.gmra.mxu0 %v739
        %v923 = vpop.f32.mrf.mxu0
        %v924 = vadd.f32 %v820, %v923
        %v925 = vpop.f32.mrf.mxu0
        %v926 = vadd.f32 %v820, %v925
        %927 = vmatmul.bf16.gmra.mxu0 %v740
        %v928 = vpop.f32.mrf.mxu0
        %v929 = vadd.f32 %v820, %v928
        %v930 = vpop.f32.mrf.mxu0
        %v931 = vadd.f32 %v820, %v930
        %932 = vmatmul.bf16.gmra.mxu0 %v741
        %v933 = vpop.f32.mrf.mxu0
        %v934 = vadd.f32 %v820, %v933
        %v935 = vpop.f32.mrf.mxu0
        %v936 = vadd.f32 %v820, %v935
        %937 = vmatmul.bf16.gmra.mxu0 %v742
        %v938 = vpop.f32.mrf.mxu0
        %v939 = vadd.f32 %v820, %v938
        %v940 = vpop.f32.mrf.mxu0
        %v941 = vadd.f32 %v820, %v940
        %942 = vmatmul.bf16.gmra.mxu0 %v743
        %v943 = vpop.f32.mrf.mxu0
        %v944 = vadd.f32 %v820, %v943
        %v945 = vpop.f32.mrf.mxu0
        %v946 = vadd.f32 %v820, %v945
        %947 = vmatmul.bf16.gmra.mxu0 %v744
        %v948 = vpop.f32.mrf.mxu0
        %v949 = vadd.f32 %v820, %v948
        %v950 = vpop.f32.mrf.mxu0
        %v951 = vadd.f32 %v820, %v950
        %952 = vdwg.mxu0
        %953 = vmatpush.bf16.msra.mxu0 %v887
        %954 = vmatpush.bf16.msra.mxu0 %v885
        %955 = vmatpush.bf16.msra.mxu0 %v883
        %956 = vmatpush.bf16.msra.mxu0 %v881
        %957 = vmatpush.bf16.msra.mxu0 %v879
        %958 = vmatpush.bf16.msra.mxu0 %v877
        %959 = vmatpush.bf16.msra.mxu0 %v875
        %960 = vmatpush.bf16.msra.mxu0 %v873
        %961 = vmatmul.bf16.gmra.mxu0 %v737
        %v962 = vpop.f32.mrf.mxu0
        %v963 = vadd.f32 %v821, %v962
        %v964 = vpop.f32.mrf.mxu0
        %v965 = vadd.f32 %v821, %v964
        %966 = vmatmul.bf16.gmra.mxu0 %v738
        %v967 = vpop.f32.mrf.mxu0
        %v968 = vadd.f32 %v821, %v967
        %v969 = vpop.f32.mrf.mxu0
        %v970 = vadd.f32 %v821, %v969
        %971 = vmatmul.bf16.gmra.mxu0 %v739
        %v972 = vpop.f32.mrf.mxu0
        %v973 = vadd.f32 %v821, %v972
        %v974 = vpop.f32.mrf.mxu0
        %v975 = vadd.f32 %v821, %v974
        %976 = vmatmul.bf16.gmra.mxu0 %v740
        %v977 = vpop.f32.mrf.mxu0
        %v978 = vadd.f32 %v821, %v977
        %v979 = vpop.f32.mrf.mxu0
        %v980 = vadd.f32 %v821, %v979
        %981 = vmatmul.bf16.gmra.mxu0 %v741
        %v982 = vpop.f32.mrf.mxu0
        %v983 = vadd.f32 %v821, %v982
        %v984 = vpop.f32.mrf.mxu0
        %v985 = vadd.f32 %v821, %v984
        %986 = vmatmul.bf16.gmra.mxu0 %v742
        %v987 = vpop.f32.mrf.mxu0
        %v988 = vadd.f32 %v821, %v987
        %v989 = vpop.f32.mrf.mxu0
        %v990 = vadd.f32 %v821, %v989
        %991 = vmatmul.bf16.gmra.mxu0 %v743
        %v992 = vpop.f32.mrf.mxu0
        %v993 = vadd.f32 %v821, %v992
        %v994 = vpop.f32.mrf.mxu0
        %v995 = vadd.f32 %v821, %v994
        %996 = vmatmul.bf16.gmra.mxu0 %v744
        %v997 = vpop.f32.mrf.mxu0
        %v998 = vadd.f32 %v821, %v997
        %v999 = vpop.f32.mrf.mxu0
        %v1000 = vadd.f32 %v821, %v999
        %1001 = vdwg.mxu0
        %v1002 = vmax.f32 %v914, 0.0
        %v1003 = vmax.f32 %v963, 0.0
        %v1004 = vmax.f32 %v916, 0.0
        %v1005 = vmax.f32 %v965, 0.0
        %v1006 = vmax.f32 %v919, 0.0
        %v1007 = vmax.f32 %v968, 0.0
        %v1008 = vmax.f32 %v921, 0.0
        %v1009 = vmax.f32 %v970, 0.0
        %v1010 = vmax.f32 %v924, 0.0
        %v1011 = vmax.f32 %v973, 0.0
        %v1012 = vmax.f32 %v926, 0.0
        %v1013 = vmax.f32 %v975, 0.0
        %v1014 = vmax.f32 %v929, 0.0
        %v1015 = vmax.f32 %v978, 0.0
        %v1016 = vmax.f32 %v931, 0.0
        %v1017 = vmax.f32 %v980, 0.0
        %v1018 = vmax.f32 %v934, 0.0
        %v1019 = vmax.f32 %v983, 0.0
        %v1020 = vmax.f32 %v936, 0.0
        %v1021 = vmax.f32 %v985, 0.0
        %v1022 = vmax.f32 %v939, 0.0
        %v1023 = vmax.f32 %v988, 0.0
        %v1024 = vmax.f32 %v941, 0.0
        %v1025 = vmax.f32 %v990, 0.0
        %v1026 = vmax.f32 %v944, 0.0
        %v1027 = vmax.f32 %v993, 0.0
        %v1028 = vmax.f32 %v946, 0.0
        %v1029 = vmax.f32 %v995, 0.0
        %v1030 = vmax.f32 %v949, 0.0
        %v1031 = vmax.f32 %v998, 0.0
        %v1032 = vmax.f32 %v951, 0.0
        %v1033 = vmax.f32 %v1000, 0.0
        %v1034 = vpack.c.bf16 %v765, %v763
        %v1035 = vpack.c.bf16 %v770, %v768
        %v1036 = vpack.c.bf16 %v775, %v773
        %v1037 = vpack.c.bf16 %v780, %v778
        %v1038 = vpack.c.bf16 %v785, %v783
        %v1039 = vpack.c.bf16 %v790, %v788
        %v1040 = vpack.c.bf16 %v795, %v793
        %v1041 = vpack.c.bf16 %v800, %v798
        %v1042 = vld [vmem:[#allocation9] sm:$0xf]
        %v1043 = vld [vmem:[#allocation9 + $0x4] sm:$0xf]
        %v1044 = vld [vmem:[#allocation9 + $0x8] sm:$0xf]
        %v1045 = vld [vmem:[#allocation9 + $0xc] sm:$0xf]
        %v1046 = vld [vmem:[#allocation9 + $0x10] sm:$0xf]
        %v1047 = vld [vmem:[#allocation9 + $0x14] sm:$0xf]
        %v1048 = vld [vmem:[#allocation9 + $0x18] sm:$0xf]
        %v1049 = vld [vmem:[#allocation9 + $0x1c] sm:$0xf]
        %v1050 = vld [vmem:[#allocation9 + $0x20] sm:$0xf]
        %v1051 = vld [vmem:[#allocation9 + $0x24] sm:$0xf]
        %v1052 = vld [vmem:[#allocation9 + $0x28] sm:$0xf]
        %v1053 = vld [vmem:[#allocation9 + $0x2c] sm:$0xf]
        %v1054 = vld [vmem:[#allocation9 + $0x30] sm:$0xf]
        %v1055 = vld [vmem:[#allocation9 + $0x34] sm:$0xf]
        %v1056 = vld [vmem:[#allocation9 + $0x38] sm:$0xf]
        %v1057 = vld [vmem:[#allocation9 + $0x3c] sm:$0xf]
        %v1058 = vld [vmem:[#allocation11] sm:$0x1]
        %v1060 = vperm.slane %v1058, 0
        %v1078 = vunpack.c.l.b16 %v1042
        %v1079 = vunpack.c.l.b16 %v1043
        %v1080 = vunpack.c.l.b16 %v1044
        %v1081 = vunpack.c.l.b16 %v1045
        %v1082 = vunpack.c.l.b16 %v1046
        %v1083 = vunpack.c.l.b16 %v1047
        %v1084 = vunpack.c.l.b16 %v1048
        %v1085 = vunpack.c.l.b16 %v1049
        %v1086 = vunpack.c.l.b16 %v1050
        %v1087 = vunpack.c.l.b16 %v1051
        %v1088 = vunpack.c.l.b16 %v1052
        %v1089 = vunpack.c.l.b16 %v1053
        %v1090 = vunpack.c.l.b16 %v1054
        %v1091 = vunpack.c.l.b16 %v1055
        %v1092 = vunpack.c.l.b16 %v1056
        %v1093 = vunpack.c.l.b16 %v1057
        %v1094 = vpack.c.b16 %v1079, %v1078
        %v1095 = vpack.c.b16 %v1081, %v1080
        %v1096 = vpack.c.b16 %v1083, %v1082
        %v1097 = vpack.c.b16 %v1085, %v1084
        %v1098 = vpack.c.b16 %v1087, %v1086
        %v1099 = vpack.c.b16 %v1089, %v1088
        %v1100 = vpack.c.b16 %v1091, %v1090
        %v1101 = vpack.c.b16 %v1093, %v1092
        %1110 = vmatpush.bf16.msra.mxu0 %v1101
        %1111 = vmatpush.bf16.msra.mxu0 %v1100
        %1112 = vmatpush.bf16.msra.mxu0 %v1099
        %1113 = vmatpush.bf16.msra.mxu0 %v1098
        %1114 = vmatpush.bf16.msra.mxu0 %v1097
        %1115 = vmatpush.bf16.msra.mxu0 %v1096
        %1116 = vmatpush.bf16.msra.mxu0 %v1095
        %1117 = vmatpush.bf16.msra.mxu0 %v1094
        %1118 = vmatmul.bf16.gmra.mxu0 %v1034
        %v1119 = vpop.f32.mrf.mxu0
        %v1120 = vadd.f32 %v1060, %v1119
        %v1121 = vpop.f32.mrf.mxu0
        %v1122 = vadd.f32 %v1060, %v1121
        %1123 = vmatmul.bf16.gmra.mxu0 %v1035
        %v1124 = vpop.f32.mrf.mxu0
        %v1125 = vadd.f32 %v1060, %v1124
        %v1126 = vpop.f32.mrf.mxu0
        %v1127 = vadd.f32 %v1060, %v1126
        %1128 = vmatmul.bf16.gmra.mxu0 %v1036
        %v1129 = vpop.f32.mrf.mxu0
        %v1130 = vadd.f32 %v1060, %v1129
        %v1131 = vpop.f32.mrf.mxu0
        %v1132 = vadd.f32 %v1060, %v1131
        %1133 = vmatmul.bf16.gmra.mxu0 %v1037
        %v1134 = vpop.f32.mrf.mxu0
        %v1135 = vadd.f32 %v1060, %v1134
        %v1136 = vpop.f32.mrf.mxu0
        %v1137 = vadd.f32 %v1060, %v1136
        %1138 = vmatmul.bf16.gmra.mxu0 %v1038
        %v1139 = vpop.f32.mrf.mxu0
        %v1140 = vadd.f32 %v1060, %v1139
        %v1141 = vpop.f32.mrf.mxu0
        %v1142 = vadd.f32 %v1060, %v1141
        %1143 = vmatmul.bf16.gmra.mxu0 %v1039
        %v1144 = vpop.f32.mrf.mxu0
        %v1145 = vadd.f32 %v1060, %v1144
        %v1146 = vpop.f32.mrf.mxu0
        %v1147 = vadd.f32 %v1060, %v1146
        %1148 = vmatmul.bf16.gmra.mxu0 %v1040
        %v1149 = vpop.f32.mrf.mxu0
        %v1150 = vadd.f32 %v1060, %v1149
        %v1151 = vpop.f32.mrf.mxu0
        %v1152 = vadd.f32 %v1060, %v1151
        %1153 = vmatmul.bf16.gmra.mxu0 %v1041
        %v1154 = vpop.f32.mrf.mxu0
        %v1155 = vadd.f32 %v1060, %v1154
        %v1156 = vpop.f32.mrf.mxu0
        %v1157 = vadd.f32 %v1060, %v1156
        %1158 = vdwg.mxu0
        %v1159 = vmax.f32 %v1120, 0.0
        %v1160 = vmax.f32 %v1122, 0.0
        %v1161 = vmax.f32 %v1125, 0.0
        %v1162 = vmax.f32 %v1127, 0.0
        %v1163 = vmax.f32 %v1130, 0.0
        %v1164 = vmax.f32 %v1132, 0.0
        %v1165 = vmax.f32 %v1135, 0.0
        %v1166 = vmax.f32 %v1137, 0.0
        %v1167 = vmax.f32 %v1140, 0.0
        %v1168 = vmax.f32 %v1142, 0.0
        %v1169 = vmax.f32 %v1145, 0.0
        %v1170 = vmax.f32 %v1147, 0.0
        %v1171 = vmax.f32 %v1150, 0.0
        %v1172 = vmax.f32 %v1152, 0.0
        %v1173 = vmax.f32 %v1155, 0.0
        %v1174 = vmax.f32 %v1157, 0.0
        %v1175 = vadd.f32 %v1002, %v1159
        %v1176 = vadd.f32 %v1004, %v1160
        %v1177 = vadd.f32 %v1006, %v1161
        %v1178 = vadd.f32 %v1008, %v1162
        %v1179 = vadd.f32 %v1010, %v1163
        %v1180 = vadd.f32 %v1012, %v1164
        %v1181 = vadd.f32 %v1014, %v1165
        %v1182 = vadd.f32 %v1016, %v1166
        %v1183 = vadd.f32 %v1018, %v1167
        %v1184 = vadd.f32 %v1020, %v1168
        %v1185 = vadd.f32 %v1022, %v1169
        %v1186 = vadd.f32 %v1024, %v1170
        %v1187 = vadd.f32 %v1026, %v1171
        %v1188 = vadd.f32 %v1028, %v1172
        %v1189 = vadd.f32 %v1030, %v1173
        %v1190 = vadd.f32 %v1032, %v1174
        %1191 = vrot.lane.b32.xlu0 %v1003, 64
        %v1192 = vpop.permute.xlu0 %1191
        %1193 = vrot.lane.b32.xlu0 %v1005, 64
        %v1194 = vpop.permute.xlu0 %1193
        %1195 = vrot.lane.b32.xlu0 %v1007, 64
        %v1196 = vpop.permute.xlu0 %1195
        %1197 = vrot.lane.b32.xlu0 %v1009, 64
        %v1198 = vpop.permute.xlu0 %1197
        %1199 = vrot.lane.b32.xlu0 %v1011, 64
        %v1200 = vpop.permute.xlu0 %1199
        %1201 = vrot.lane.b32.xlu0 %v1013, 64
        %v1202 = vpop.permute.xlu0 %1201
        %1203 = vrot.lane.b32.xlu0 %v1015, 64
        %v1204 = vpop.permute.xlu0 %1203
        %1205 = vrot.lane.b32.xlu0 %v1017, 64
        %v1206 = vpop.permute.xlu0 %1205
        %1207 = vrot.lane.b32.xlu0 %v1019, 64
        %v1208 = vpop.permute.xlu0 %1207
        %1209 = vrot.lane.b32.xlu0 %v1021, 64
        %v1210 = vpop.permute.xlu0 %1209
        %1211 = vrot.lane.b32.xlu0 %v1023, 64
        %v1212 = vpop.permute.xlu0 %1211
        %1213 = vrot.lane.b32.xlu0 %v1025, 64
        %v1214 = vpop.permute.xlu0 %1213
        %1215 = vrot.lane.b32.xlu0 %v1027, 64
        %v1216 = vpop.permute.xlu0 %1215
        %1217 = vrot.lane.b32.xlu0 %v1029, 64
        %v1218 = vpop.permute.xlu0 %1217
        %1219 = vrot.lane.b32.xlu0 %v1031, 64
        %v1220 = vpop.permute.xlu0 %1219
        %1221 = vrot.lane.b32.xlu0 %v1033, 64
        %v1222 = vpop.permute.xlu0 %1221
        %v1223 = vmul.f32 %v1003, %v1192
        %v1224 = vmul.f32 %v1005, %v1194
        %v1225 = vmul.f32 %v1007, %v1196
        %v1226 = vmul.f32 %v1009, %v1198
        %v1227 = vmul.f32 %v1011, %v1200
        %v1228 = vmul.f32 %v1013, %v1202
        %v1229 = vmul.f32 %v1015, %v1204
        %v1230 = vmul.f32 %v1017, %v1206
        %v1231 = vmul.f32 %v1019, %v1208
        %v1232 = vmul.f32 %v1021, %v1210
        %v1233 = vmul.f32 %v1023, %v1212
        %v1234 = vmul.f32 %v1025, %v1214
        %v1235 = vmul.f32 %v1027, %v1216
        %v1236 = vmul.f32 %v1029, %v1218
        %v1237 = vmul.f32 %v1031, %v1220
        %v1238 = vmul.f32 %v1033, %v1222
        %v1239 = vld [vmem:[%s6] sm:$0x1]
        %v1241 = vperm.slane %v1239, 0
        %v1243 = vmul.f32 %v1175, %v1241
        %v1244 = vmul.f32 %v1176, %v1241
        %v1245 = vmul.f32 %v1177, %v1241
        %v1246 = vmul.f32 %v1178, %v1241
        %v1247 = vmul.f32 %v1179, %v1241
        %v1248 = vmul.f32 %v1180, %v1241
        %v1249 = vmul.f32 %v1181, %v1241
        %v1250 = vmul.f32 %v1182, %v1241
        %v1251 = vmul.f32 %v1183, %v1241
        %v1252 = vmul.f32 %v1184, %v1241
        %v1253 = vmul.f32 %v1185, %v1241
        %v1254 = vmul.f32 %v1186, %v1241
        %v1255 = vmul.f32 %v1187, %v1241
        %v1256 = vmul.f32 %v1188, %v1241
        %v1257 = vmul.f32 %v1189, %v1241
        %v1258 = vmul.f32 %v1190, %v1241
        %v1259 = vld [vmem:[%s7] sm:$0x1]
        %v1261 = vperm.slane %v1259, 0
        %v1263 = vadd.f32 %v1243, %v1261
        %v1264 = vadd.f32 %v1244, %v1261
        %v1265 = vadd.f32 %v1245, %v1261
        %v1266 = vadd.f32 %v1246, %v1261
        %v1267 = vadd.f32 %v1247, %v1261
        %v1268 = vadd.f32 %v1248, %v1261
        %v1269 = vadd.f32 %v1249, %v1261
        %v1270 = vadd.f32 %v1250, %v1261
        %v1271 = vadd.f32 %v1251, %v1261
        %v1272 = vadd.f32 %v1252, %v1261
        %v1273 = vadd.f32 %v1253, %v1261
        %v1274 = vadd.f32 %v1254, %v1261
        %v1275 = vadd.f32 %v1255, %v1261
        %v1276 = vadd.f32 %v1256, %v1261
        %v1277 = vadd.f32 %v1257, %v1261
        %v1278 = vadd.f32 %v1258, %v1261
        %1279 = vst [vmem:[#allocation2] sm:$0xff] %v1263
        %1280 = vst [vmem:[#allocation2 + $0x10] sm:$0xff] %v1264
        %1281 = vst [vmem:[#allocation2 + $0x20] sm:$0xff] %v1265
        %1282 = vst [vmem:[#allocation2 + $0x30] sm:$0xff] %v1266
        %1283 = vst [vmem:[#allocation2 + $0x40] sm:$0xff] %v1267
        %1284 = vst [vmem:[#allocation2 + $0x50] sm:$0xff] %v1268
        %1285 = vst [vmem:[#allocation2 + $0x60] sm:$0xff] %v1269
        %1286 = vst [vmem:[#allocation2 + $0x70] sm:$0xff] %v1270
        %1287 = vst [vmem:[#allocation2 + $0x80] sm:$0xff] %v1271
        %1288 = vst [vmem:[#allocation2 + $0x90] sm:$0xff] %v1272
        %1289 = vst [vmem:[#allocation2 + $0xa0] sm:$0xff] %v1273
        %1290 = vst [vmem:[#allocation2 + $0xb0] sm:$0xff] %v1274
        %1291 = vst [vmem:[#allocation2 + $0xc0] sm:$0xff] %v1275
        %1292 = vst [vmem:[#allocation2 + $0xd0] sm:$0xff] %v1276
        %1293 = vst [vmem:[#allocation2 + $0xe0] sm:$0xff] %v1277
        %1294 = vst [vmem:[#allocation2 + $0xf0] sm:$0xff] %v1278
        %v1295 = vld [vmem:[%s6 + $0x1] sm:$0x1]
        %v1297 = vperm.slane %v1295, 0
        %v1299 = vmul.f32 %v1223, %v1297
        %v1300 = vmul.f32 %v1224, %v1297
        %v1301 = vmul.f32 %v1225, %v1297
        %v1302 = vmul.f32 %v1226, %v1297
        %v1303 = vmul.f32 %v1227, %v1297
        %v1304 = vmul.f32 %v1228, %v1297
        %v1305 = vmul.f32 %v1229, %v1297
        %v1306 = vmul.f32 %v1230, %v1297
        %v1307 = vmul.f32 %v1231, %v1297
        %v1308 = vmul.f32 %v1232, %v1297
        %v1309 = vmul.f32 %v1233, %v1297
        %v1310 = vmul.f32 %v1234, %v1297
        %v1311 = vmul.f32 %v1235, %v1297
        %v1312 = vmul.f32 %v1236, %v1297
        %v1313 = vmul.f32 %v1237, %v1297
        %v1314 = vmul.f32 %v1238, %v1297
        %v1315 = vld [vmem:[%s7 + $0x1] sm:$0x1]
        %v1317 = vperm.slane %v1315, 0
        %v1319 = vadd.f32 %v1299, %v1317
        %v1320 = vadd.f32 %v1300, %v1317
        %v1321 = vadd.f32 %v1301, %v1317
        %v1322 = vadd.f32 %v1302, %v1317
        %v1323 = vadd.f32 %v1303, %v1317
        %v1324 = vadd.f32 %v1304, %v1317
        %v1325 = vadd.f32 %v1305, %v1317
        %v1326 = vadd.f32 %v1306, %v1317
        %v1327 = vadd.f32 %v1307, %v1317
        %v1328 = vadd.f32 %v1308, %v1317
        %v1329 = vadd.f32 %v1309, %v1317
        %v1330 = vadd.f32 %v1310, %v1317
        %v1331 = vadd.f32 %v1311, %v1317
        %v1332 = vadd.f32 %v1312, %v1317
        %v1333 = vadd.f32 %v1313, %v1317
        %v1334 = vadd.f32 %v1314, %v1317
        %1335 = vst [vmem:[#allocation2 + $0x8] sm:$0xff] %v1319
        %1336 = vst [vmem:[#allocation2 + $0x18] sm:$0xff] %v1320
        %1337 = vst [vmem:[#allocation2 + $0x28] sm:$0xff] %v1321
        %1338 = vst [vmem:[#allocation2 + $0x38] sm:$0xff] %v1322
        %1339 = vst [vmem:[#allocation2 + $0x48] sm:$0xff] %v1323
        %1340 = vst [vmem:[#allocation2 + $0x58] sm:$0xff] %v1324
        %1341 = vst [vmem:[#allocation2 + $0x68] sm:$0xff] %v1325
        %1342 = vst [vmem:[#allocation2 + $0x78] sm:$0xff] %v1326
        %1343 = vst [vmem:[#allocation2 + $0x88] sm:$0xff] %v1327
        %1344 = vst [vmem:[#allocation2 + $0x98] sm:$0xff] %v1328
        %1345 = vst [vmem:[#allocation2 + $0xa8] sm:$0xff] %v1329
        %1346 = vst [vmem:[#allocation2 + $0xb8] sm:$0xff] %v1330
        %1347 = vst [vmem:[#allocation2 + $0xc8] sm:$0xff] %v1331
        %1348 = vst [vmem:[#allocation2 + $0xd8] sm:$0xff] %v1332
        %1349 = vst [vmem:[#allocation2 + $0xe8] sm:$0xff] %v1333
        %1350 = vst [vmem:[#allocation2 + $0xf8] sm:$0xff] %v1334
        %v1351 = vld [vmem:[#allocation2] sm:$0xff]
        %v1352 = vld [vmem:[#allocation2 + $0x8] sm:$0xff]
        %v1353 = vld [vmem:[#allocation2 + $0x10] sm:$0xff]
        %v1354 = vld [vmem:[#allocation2 + $0x18] sm:$0xff]
        %v1355 = vld [vmem:[#allocation2 + $0x20] sm:$0xff]
        %v1356 = vld [vmem:[#allocation2 + $0x28] sm:$0xff]
        %v1357 = vld [vmem:[#allocation2 + $0x30] sm:$0xff]
        %v1358 = vld [vmem:[#allocation2 + $0x38] sm:$0xff]
        %v1359 = vld [vmem:[#allocation2 + $0x40] sm:$0xff]
        %v1360 = vld [vmem:[#allocation2 + $0x48] sm:$0xff]
        %v1361 = vld [vmem:[#allocation2 + $0x50] sm:$0xff]
        %v1362 = vld [vmem:[#allocation2 + $0x58] sm:$0xff]
        %v1363 = vld [vmem:[#allocation2 + $0x60] sm:$0xff]
        %v1364 = vld [vmem:[#allocation2 + $0x68] sm:$0xff]
        %v1365 = vld [vmem:[#allocation2 + $0x70] sm:$0xff]
        %v1366 = vld [vmem:[#allocation2 + $0x78] sm:$0xff]
        %v1367 = vld [vmem:[#allocation2 + $0x80] sm:$0xff]
        %v1368 = vld [vmem:[#allocation2 + $0x88] sm:$0xff]
        %v1369 = vld [vmem:[#allocation2 + $0x90] sm:$0xff]
        %v1370 = vld [vmem:[#allocation2 + $0x98] sm:$0xff]
        %v1371 = vld [vmem:[#allocation2 + $0xa0] sm:$0xff]
        %v1372 = vld [vmem:[#allocation2 + $0xa8] sm:$0xff]
        %v1373 = vld [vmem:[#allocation2 + $0xb0] sm:$0xff]
        %v1374 = vld [vmem:[#allocation2 + $0xb8] sm:$0xff]
        %v1375 = vld [vmem:[#allocation2 + $0xc0] sm:$0xff]
        %v1376 = vld [vmem:[#allocation2 + $0xc8] sm:$0xff]
        %v1377 = vld [vmem:[#allocation2 + $0xd0] sm:$0xff]
        %v1378 = vld [vmem:[#allocation2 + $0xd8] sm:$0xff]
        %v1379 = vld [vmem:[#allocation2 + $0xe0] sm:$0xff]
        %v1380 = vld [vmem:[#allocation2 + $0xe8] sm:$0xff]
        %v1381 = vld [vmem:[#allocation2 + $0xf0] sm:$0xff]
        %v1382 = vld [vmem:[#allocation2 + $0xf8] sm:$0xff]
        %v1383 = vpack.c.bf16 %v1353, %v1351
        %v1384 = vpack.c.bf16 %v1354, %v1352
        %v1385 = vpack.c.bf16 %v1357, %v1355
        %v1386 = vpack.c.bf16 %v1358, %v1356
        %v1387 = vpack.c.bf16 %v1361, %v1359
        %v1388 = vpack.c.bf16 %v1362, %v1360
        %v1389 = vpack.c.bf16 %v1365, %v1363
        %v1390 = vpack.c.bf16 %v1366, %v1364
        %v1391 = vpack.c.bf16 %v1369, %v1367
        %v1392 = vpack.c.bf16 %v1370, %v1368
        %v1393 = vpack.c.bf16 %v1373, %v1371
        %v1394 = vpack.c.bf16 %v1374, %v1372
        %v1395 = vpack.c.bf16 %v1377, %v1375
        %v1396 = vpack.c.bf16 %v1378, %v1376
        %v1397 = vpack.c.bf16 %v1381, %v1379
        %v1398 = vpack.c.bf16 %v1382, %v1380
        %1399 = vmatpush.bf16.msra.mxu0 %v1397
        %1400 = vmatpush.bf16.msra.mxu0 %v1395
        %1401 = vmatpush.bf16.msra.mxu0 %v1393
        %1402 = vmatpush.bf16.msra.mxu0 %v1391
        %1403 = vmatpush.bf16.msra.mxu0 %v1389
        %1404 = vmatpush.bf16.msra.mxu0 %v1387
        %1405 = vmatpush.bf16.msra.mxu0 %v1385
        %1406 = vmatpush.bf16.msra.mxu0 %v1383
        %1407 = vmatmul.bf16.gmra.mxu0 %v689
        %v1408 = vpop.f32.mrf.mxu0
        %v1409 = vadd.f32 0.0, %v1408
        %v1410 = vpop.f32.mrf.mxu0
        %v1411 = vadd.f32 0.0, %v1410
        %1412 = vmatmul.bf16.gmra.mxu0 %v690
        %v1413 = vpop.f32.mrf.mxu0
        %v1414 = vadd.f32 0.0, %v1413
        %v1415 = vpop.f32.mrf.mxu0
        %v1416 = vadd.f32 0.0, %v1415
        %1417 = vmatmul.bf16.gmra.mxu0 %v691
        %v1418 = vpop.f32.mrf.mxu0
        %v1419 = vadd.f32 0.0, %v1418
        %v1420 = vpop.f32.mrf.mxu0
        %v1421 = vadd.f32 0.0, %v1420
        %1422 = vmatmul.bf16.gmra.mxu0 %v692
        %v1423 = vpop.f32.mrf.mxu0
        %v1424 = vadd.f32 0.0, %v1423
        %v1425 = vpop.f32.mrf.mxu0
        %v1426 = vadd.f32 0.0, %v1425
        %1427 = vmatmul.bf16.gmra.mxu0 %v693
        %v1428 = vpop.f32.mrf.mxu0
        %v1429 = vadd.f32 0.0, %v1428
        %v1430 = vpop.f32.mrf.mxu0
        %v1431 = vadd.f32 0.0, %v1430
        %1432 = vmatmul.bf16.gmra.mxu0 %v694
        %v1433 = vpop.f32.mrf.mxu0
        %v1434 = vadd.f32 0.0, %v1433
        %v1435 = vpop.f32.mrf.mxu0
        %v1436 = vadd.f32 0.0, %v1435
        %1437 = vmatmul.bf16.gmra.mxu0 %v695
        %v1438 = vpop.f32.mrf.mxu0
        %v1439 = vadd.f32 0.0, %v1438
        %v1440 = vpop.f32.mrf.mxu0
        %v1441 = vadd.f32 0.0, %v1440
        %1442 = vmatmul.bf16.gmra.mxu0 %v696
        %v1443 = vpop.f32.mrf.mxu0
        %v1444 = vadd.f32 0.0, %v1443
        %v1445 = vpop.f32.mrf.mxu0
        %v1446 = vadd.f32 0.0, %v1445
        %1447 = vdwg.mxu0
        %1448 = vmatpush.bf16.msra.mxu0 %v1398
        %1449 = vmatpush.bf16.msra.mxu0 %v1396
        %1450 = vmatpush.bf16.msra.mxu0 %v1394
        %1451 = vmatpush.bf16.msra.mxu0 %v1392
        %1452 = vmatpush.bf16.msra.mxu0 %v1390
        %1453 = vmatpush.bf16.msra.mxu0 %v1388
        %1454 = vmatpush.bf16.msra.mxu0 %v1386
        %1455 = vmatpush.bf16.msra.mxu0 %v1384
        %1456 = vmatmul.bf16.gmra.mxu0 %v689
        %v1457 = vpop.f32.mrf.mxu0
        %v1458 = vadd.f32 0.0, %v1457
        %v1459 = vpop.f32.mrf.mxu0
        %v1460 = vadd.f32 0.0, %v1459
        %1461 = vmatmul.bf16.gmra.mxu0 %v690
        %v1462 = vpop.f32.mrf.mxu0
        %v1463 = vadd.f32 0.0, %v1462
        %v1464 = vpop.f32.mrf.mxu0
        %v1465 = vadd.f32 0.0, %v1464
        %1466 = vmatmul.bf16.gmra.mxu0 %v691
        %v1467 = vpop.f32.mrf.mxu0
        %v1468 = vadd.f32 0.0, %v1467
        %v1469 = vpop.f32.mrf.mxu0
        %v1470 = vadd.f32 0.0, %v1469
        %1471 = vmatmul.bf16.gmra.mxu0 %v692
        %v1472 = vpop.f32.mrf.mxu0
        %v1473 = vadd.f32 0.0, %v1472
        %v1474 = vpop.f32.mrf.mxu0
        %v1475 = vadd.f32 0.0, %v1474
        %1476 = vmatmul.bf16.gmra.mxu0 %v693
        %v1477 = vpop.f32.mrf.mxu0
        %v1478 = vadd.f32 0.0, %v1477
        %v1479 = vpop.f32.mrf.mxu0
        %v1480 = vadd.f32 0.0, %v1479
        %1481 = vmatmul.bf16.gmra.mxu0 %v694
        %v1482 = vpop.f32.mrf.mxu0
        %v1483 = vadd.f32 0.0, %v1482
        %v1484 = vpop.f32.mrf.mxu0
        %v1485 = vadd.f32 0.0, %v1484
        %1486 = vmatmul.bf16.gmra.mxu0 %v695
        %v1487 = vpop.f32.mrf.mxu0
        %v1488 = vadd.f32 0.0, %v1487
        %v1489 = vpop.f32.mrf.mxu0
        %v1490 = vadd.f32 0.0, %v1489
        %1491 = vmatmul.bf16.gmra.mxu0 %v696
        %v1492 = vpop.f32.mrf.mxu0
        %v1493 = vadd.f32 0.0, %v1492
        %v1494 = vpop.f32.mrf.mxu0
        %v1495 = vadd.f32 0.0, %v1494
        %1496 = vdwg.mxu0
        %v1497 = vld [vmem:[#allocation12] sm:$0xff]
        %v1498 = vld [vmem:[#allocation12 + $0x8] sm:$0xff]
        %v1499 = vld [vmem:[#allocation12 + $0x10] sm:$0xff]
        %v1500 = vld [vmem:[#allocation12 + $0x18] sm:$0xff]
        %v1501 = vld [vmem:[#allocation12 + $0x20] sm:$0xff]
        %v1502 = vld [vmem:[#allocation12 + $0x28] sm:$0xff]
        %v1503 = vld [vmem:[#allocation12 + $0x30] sm:$0xff]
        %v1504 = vld [vmem:[#allocation12 + $0x38] sm:$0xff]
        %v1505 = vld [vmem:[#allocation12 + $0x40] sm:$0xff]
        %v1506 = vld [vmem:[#allocation12 + $0x48] sm:$0xff]
        %v1507 = vld [vmem:[#allocation12 + $0x50] sm:$0xff]
        %v1508 = vld [vmem:[#allocation12 + $0x58] sm:$0xff]
        %v1509 = vld [vmem:[#allocation12 + $0x60] sm:$0xff]
        %v1510 = vld [vmem:[#allocation12 + $0x68] sm:$0xff]
        %v1511 = vld [vmem:[#allocation12 + $0x70] sm:$0xff]
        %v1512 = vld [vmem:[#allocation12 + $0x78] sm:$0xff]
        %v1513 = vld [vmem:[#allocation12 + $0x80] sm:$0xff]
        %v1514 = vld [vmem:[#allocation12 + $0x88] sm:$0xff]
        %v1515 = vld [vmem:[#allocation12 + $0x90] sm:$0xff]
        %v1516 = vld [vmem:[#allocation12 + $0x98] sm:$0xff]
        %v1517 = vld [vmem:[#allocation12 + $0xa0] sm:$0xff]
        %v1518 = vld [vmem:[#allocation12 + $0xa8] sm:$0xff]
        %v1519 = vld [vmem:[#allocation12 + $0xb0] sm:$0xff]
        %v1520 = vld [vmem:[#allocation12 + $0xb8] sm:$0xff]
        %v1521 = vld [vmem:[#allocation12 + $0xc0] sm:$0xff]
        %v1522 = vld [vmem:[#allocation12 + $0xc8] sm:$0xff]
        %v1523 = vld [vmem:[#allocation12 + $0xd0] sm:$0xff]
        %v1524 = vld [vmem:[#allocation12 + $0xd8] sm:$0xff]
        %v1525 = vld [vmem:[#allocation12 + $0xe0] sm:$0xff]
        %v1526 = vld [vmem:[#allocation12 + $0xe8] sm:$0xff]
        %v1527 = vld [vmem:[#allocation12 + $0xf0] sm:$0xff]
        %v1528 = vld [vmem:[#allocation12 + $0xf8] sm:$0xff]
        %v1529 = vld [vmem:[%s9] sm:$0x3]
        %v1531 = vperm.slane %v1529, 0
        %v1532 = vperm.slane %v1529, 1
        %v1567 = vunpack.c.l.b16 %v1497
        %v1568 = vunpack.c.h.b16 %v1497
        %v1569 = vunpack.c.l.b16 %v1498
        %v1570 = vunpack.c.h.b16 %v1498
        %v1571 = vunpack.c.l.b16 %v1499
        %v1572 = vunpack.c.h.b16 %v1499
        %v1573 = vunpack.c.l.b16 %v1500
        %v1574 = vunpack.c.h.b16 %v1500
        %v1575 = vunpack.c.l.b16 %v1501
        %v1576 = vunpack.c.h.b16 %v1501
        %v1577 = vunpack.c.l.b16 %v1502
        %v1578 = vunpack.c.h.b16 %v1502
        %v1579 = vunpack.c.l.b16 %v1503
        %v1580 = vunpack.c.h.b16 %v1503
        %v1581 = vunpack.c.l.b16 %v1504
        %v1582 = vunpack.c.h.b16 %v1504
        %v1583 = vunpack.c.l.b16 %v1505
        %v1584 = vunpack.c.h.b16 %v1505
        %v1585 = vunpack.c.l.b16 %v1506
        %v1586 = vunpack.c.h.b16 %v1506
        %v1587 = vunpack.c.l.b16 %v1507
        %v1588 = vunpack.c.h.b16 %v1507
        %v1589 = vunpack.c.l.b16 %v1508
        %v1590 = vunpack.c.h.b16 %v1508
        %v1591 = vunpack.c.l.b16 %v1509
        %v1592 = vunpack.c.h.b16 %v1509
        %v1593 = vunpack.c.l.b16 %v1510
        %v1594 = vunpack.c.h.b16 %v1510
        %v1595 = vunpack.c.l.b16 %v1511
        %v1596 = vunpack.c.h.b16 %v1511
        %v1597 = vunpack.c.l.b16 %v1512
        %v1598 = vunpack.c.h.b16 %v1512
        %v1599 = vunpack.c.l.b16 %v1513
        %v1600 = vunpack.c.h.b16 %v1513
        %v1601 = vunpack.c.l.b16 %v1514
        %v1602 = vunpack.c.h.b16 %v1514
        %v1603 = vunpack.c.l.b16 %v1515
        %v1604 = vunpack.c.h.b16 %v1515
        %v1605 = vunpack.c.l.b16 %v1516
        %v1606 = vunpack.c.h.b16 %v1516
        %v1607 = vunpack.c.l.b16 %v1517
        %v1608 = vunpack.c.h.b16 %v1517
        %v1609 = vunpack.c.l.b16 %v1518
        %v1610 = vunpack.c.h.b16 %v1518
        %v1611 = vunpack.c.l.b16 %v1519
        %v1612 = vunpack.c.h.b16 %v1519
        %v1613 = vunpack.c.l.b16 %v1520
        %v1614 = vunpack.c.h.b16 %v1520
        %v1615 = vunpack.c.l.b16 %v1521
        %v1616 = vunpack.c.h.b16 %v1521
        %v1617 = vunpack.c.l.b16 %v1522
        %v1618 = vunpack.c.h.b16 %v1522
        %v1619 = vunpack.c.l.b16 %v1523
        %v1620 = vunpack.c.h.b16 %v1523
        %v1621 = vunpack.c.l.b16 %v1524
        %v1622 = vunpack.c.h.b16 %v1524
        %v1623 = vunpack.c.l.b16 %v1525
        %v1624 = vunpack.c.h.b16 %v1525
        %v1625 = vunpack.c.l.b16 %v1526
        %v1626 = vunpack.c.h.b16 %v1526
        %v1627 = vunpack.c.l.b16 %v1527
        %v1628 = vunpack.c.h.b16 %v1527
        %v1629 = vunpack.c.l.b16 %v1528
        %v1630 = vunpack.c.h.b16 %v1528
        %v1631 = vpack.c.b16 %v1569, %v1567
        %v1632 = vpack.c.b16 %v1570, %v1568
        %v1633 = vpack.c.b16 %v1573, %v1571
        %v1634 = vpack.c.b16 %v1574, %v1572
        %v1635 = vpack.c.b16 %v1577, %v1575
        %v1636 = vpack.c.b16 %v1578, %v1576
        %v1637 = vpack.c.b16 %v1581, %v1579
        %v1638 = vpack.c.b16 %v1582, %v1580
        %v1639 = vpack.c.b16 %v1585, %v1583
        %v1640 = vpack.c.b16 %v1586, %v1584
        %v1641 = vpack.c.b16 %v1589, %v1587
        %v1642 = vpack.c.b16 %v1590, %v1588
        %v1643 = vpack.c.b16 %v1593, %v1591
        %v1644 = vpack.c.b16 %v1594, %v1592
        %v1645 = vpack.c.b16 %v1597, %v1595
        %v1646 = vpack.c.b16 %v1598, %v1596
        %v1647 = vpack.c.b16 %v1601, %v1599
        %v1648 = vpack.c.b16 %v1602, %v1600
        %v1649 = vpack.c.b16 %v1605, %v1603
        %v1650 = vpack.c.b16 %v1606, %v1604
        %v1651 = vpack.c.b16 %v1609, %v1607
        %v1652 = vpack.c.b16 %v1610, %v1608
        %v1653 = vpack.c.b16 %v1613, %v1611
        %v1654 = vpack.c.b16 %v1614, %v1612
        %v1655 = vpack.c.b16 %v1617, %v1615
        %v1656 = vpack.c.b16 %v1618, %v1616
        %v1657 = vpack.c.b16 %v1621, %v1619
        %v1658 = vpack.c.b16 %v1622, %v1620
        %v1659 = vpack.c.b16 %v1625, %v1623
        %v1660 = vpack.c.b16 %v1626, %v1624
        %v1661 = vpack.c.b16 %v1629, %v1627
        %v1662 = vpack.c.b16 %v1630, %v1628
        %1695 = vmatpush.bf16.msra.mxu0 %v1645
        %1696 = vmatpush.bf16.msra.mxu0 %v1643
        %1697 = vmatpush.bf16.msra.mxu0 %v1641
        %1698 = vmatpush.bf16.msra.mxu0 %v1639
        %1699 = vmatpush.bf16.msra.mxu0 %v1637
        %1700 = vmatpush.bf16.msra.mxu0 %v1635
        %1701 = vmatpush.bf16.msra.mxu0 %v1633
        %1702 = vmatpush.bf16.msra.mxu0 %v1631
        %1703 = vmatmul.bf16.gmra.mxu0 %v1383
        %v1704 = vpop.f32.mrf.mxu0
        %v1705 = vadd.f32 %v1531, %v1704
        %v1706 = vpop.f32.mrf.mxu0
        %v1707 = vadd.f32 %v1531, %v1706
        %1708 = vmatmul.bf16.gmra.mxu0 %v1385
        %v1709 = vpop.f32.mrf.mxu0
        %v1710 = vadd.f32 %v1531, %v1709
        %v1711 = vpop.f32.mrf.mxu0
        %v1712 = vadd.f32 %v1531, %v1711
        %1713 = vmatmul.bf16.gmra.mxu0 %v1387
        %v1714 = vpop.f32.mrf.mxu0
        %v1715 = vadd.f32 %v1531, %v1714
        %v1716 = vpop.f32.mrf.mxu0
        %v1717 = vadd.f32 %v1531, %v1716
        %1718 = vmatmul.bf16.gmra.mxu0 %v1389
        %v1719 = vpop.f32.mrf.mxu0
        %v1720 = vadd.f32 %v1531, %v1719
        %v1721 = vpop.f32.mrf.mxu0
        %v1722 = vadd.f32 %v1531, %v1721
        %1723 = vmatmul.bf16.gmra.mxu0 %v1391
        %v1724 = vpop.f32.mrf.mxu0
        %v1725 = vadd.f32 %v1531, %v1724
        %v1726 = vpop.f32.mrf.mxu0
        %v1727 = vadd.f32 %v1531, %v1726
        %1728 = vmatmul.bf16.gmra.mxu0 %v1393
        %v1729 = vpop.f32.mrf.mxu0
        %v1730 = vadd.f32 %v1531, %v1729
        %v1731 = vpop.f32.mrf.mxu0
        %v1732 = vadd.f32 %v1531, %v1731
        %1733 = vmatmul.bf16.gmra.mxu0 %v1395
        %v1734 = vpop.f32.mrf.mxu0
        %v1735 = vadd.f32 %v1531, %v1734
        %v1736 = vpop.f32.mrf.mxu0
        %v1737 = vadd.f32 %v1531, %v1736
        %1738 = vmatmul.bf16.gmra.mxu0 %v1397
        %v1739 = vpop.f32.mrf.mxu0
        %v1740 = vadd.f32 %v1531, %v1739
        %v1741 = vpop.f32.mrf.mxu0
        %v1742 = vadd.f32 %v1531, %v1741
        %1743 = vdwg.mxu0
        %1744 = vmatpush.bf16.msra.mxu0 %v1661
        %1745 = vmatpush.bf16.msra.mxu0 %v1659
        %1746 = vmatpush.bf16.msra.mxu0 %v1657
        %1747 = vmatpush.bf16.msra.mxu0 %v1655
        %1748 = vmatpush.bf16.msra.mxu0 %v1653
        %1749 = vmatpush.bf16.msra.mxu0 %v1651
        %1750 = vmatpush.bf16.msra.mxu0 %v1649
        %1751 = vmatpush.bf16.msra.mxu0 %v1647
        %1752 = vmatmul.bf16.gmra.mxu0 %v1384
        %v1753 = vpop.f32.mrf.mxu0
        %v1754 = vadd.f32 %v1705, %v1753
        %v1755 = vpop.f32.mrf.mxu0
        %v1756 = vadd.f32 %v1707, %v1755
        %1757 = vmatmul.bf16.gmra.mxu0 %v1386
        %v1758 = vpop.f32.mrf.mxu0
        %v1759 = vadd.f32 %v1710, %v1758
        %v1760 = vpop.f32.mrf.mxu0
        %v1761 = vadd.f32 %v1712, %v1760
        %1762 = vmatmul.bf16.gmra.mxu0 %v1388
        %v1763 = vpop.f32.mrf.mxu0
        %v1764 = vadd.f32 %v1715, %v1763
        %v1765 = vpop.f32.mrf.mxu0
        %v1766 = vadd.f32 %v1717, %v1765
        %1767 = vmatmul.bf16.gmra.mxu0 %v1390
        %v1768 = vpop.f32.mrf.mxu0
        %v1769 = vadd.f32 %v1720, %v1768
        %v1770 = vpop.f32.mrf.mxu0
        %v1771 = vadd.f32 %v1722, %v1770
        %1772 = vmatmul.bf16.gmra.mxu0 %v1392
        %v1773 = vpop.f32.mrf.mxu0
        %v1774 = vadd.f32 %v1725, %v1773
        %v1775 = vpop.f32.mrf.mxu0
        %v1776 = vadd.f32 %v1727, %v1775
        %1777 = vmatmul.bf16.gmra.mxu0 %v1394
        %v1778 = vpop.f32.mrf.mxu0
        %v1779 = vadd.f32 %v1730, %v1778
        %v1780 = vpop.f32.mrf.mxu0
        %v1781 = vadd.f32 %v1732, %v1780
        %1782 = vmatmul.bf16.gmra.mxu0 %v1396
        %v1783 = vpop.f32.mrf.mxu0
        %v1784 = vadd.f32 %v1735, %v1783
        %v1785 = vpop.f32.mrf.mxu0
        %v1786 = vadd.f32 %v1737, %v1785
        %1787 = vmatmul.bf16.gmra.mxu0 %v1398
        %v1788 = vpop.f32.mrf.mxu0
        %v1789 = vadd.f32 %v1740, %v1788
        %v1790 = vpop.f32.mrf.mxu0
        %v1791 = vadd.f32 %v1742, %v1790
        %1792 = vdwg.mxu0
        %1793 = vmatpush.bf16.msra.mxu0 %v1646
        %1794 = vmatpush.bf16.msra.mxu0 %v1644
        %1795 = vmatpush.bf16.msra.mxu0 %v1642
        %1796 = vmatpush.bf16.msra.mxu0 %v1640
        %1797 = vmatpush.bf16.msra.mxu0 %v1638
        %1798 = vmatpush.bf16.msra.mxu0 %v1636
        %1799 = vmatpush.bf16.msra.mxu0 %v1634
        %1800 = vmatpush.bf16.msra.mxu0 %v1632
        %1801 = vmatmul.bf16.gmra.mxu0 %v1383
        %v1802 = vpop.f32.mrf.mxu0
        %v1803 = vadd.f32 %v1532, %v1802
        %v1804 = vpop.f32.mrf.mxu0
        %v1805 = vadd.f32 %v1532, %v1804
        %1806 = vmatmul.bf16.gmra.mxu0 %v1385
        %v1807 = vpop.f32.mrf.mxu0
        %v1808 = vadd.f32 %v1532, %v1807
        %v1809 = vpop.f32.mrf.mxu0
        %v1810 = vadd.f32 %v1532, %v1809
        %1811 = vmatmul.bf16.gmra.mxu0 %v1387
        %v1812 = vpop.f32.mrf.mxu0
        %v1813 = vadd.f32 %v1532, %v1812
        %v1814 = vpop.f32.mrf.mxu0
        %v1815 = vadd.f32 %v1532, %v1814
        %1816 = vmatmul.bf16.gmra.mxu0 %v1389
        %v1817 = vpop.f32.mrf.mxu0
        %v1818 = vadd.f32 %v1532, %v1817
        %v1819 = vpop.f32.mrf.mxu0
        %v1820 = vadd.f32 %v1532, %v1819
        %1821 = vmatmul.bf16.gmra.mxu0 %v1391
        %v1822 = vpop.f32.mrf.mxu0
        %v1823 = vadd.f32 %v1532, %v1822
        %v1824 = vpop.f32.mrf.mxu0
        %v1825 = vadd.f32 %v1532, %v1824
        %1826 = vmatmul.bf16.gmra.mxu0 %v1393
        %v1827 = vpop.f32.mrf.mxu0
        %v1828 = vadd.f32 %v1532, %v1827
        %v1829 = vpop.f32.mrf.mxu0
        %v1830 = vadd.f32 %v1532, %v1829
        %1831 = vmatmul.bf16.gmra.mxu0 %v1395
        %v1832 = vpop.f32.mrf.mxu0
        %v1833 = vadd.f32 %v1532, %v1832
        %v1834 = vpop.f32.mrf.mxu0
        %v1835 = vadd.f32 %v1532, %v1834
        %1836 = vmatmul.bf16.gmra.mxu0 %v1397
        %v1837 = vpop.f32.mrf.mxu0
        %v1838 = vadd.f32 %v1532, %v1837
        %v1839 = vpop.f32.mrf.mxu0
        %v1840 = vadd.f32 %v1532, %v1839
        %1841 = vdwg.mxu0
        %1842 = vmatpush.bf16.msra.mxu0 %v1662
        %1843 = vmatpush.bf16.msra.mxu0 %v1660
        %1844 = vmatpush.bf16.msra.mxu0 %v1658
        %1845 = vmatpush.bf16.msra.mxu0 %v1656
        %1846 = vmatpush.bf16.msra.mxu0 %v1654
        %1847 = vmatpush.bf16.msra.mxu0 %v1652
        %1848 = vmatpush.bf16.msra.mxu0 %v1650
        %1849 = vmatpush.bf16.msra.mxu0 %v1648
        %1850 = vmatmul.bf16.gmra.mxu0 %v1384
        %v1851 = vpop.f32.mrf.mxu0
        %v1852 = vadd.f32 %v1803, %v1851
        %v1853 = vpop.f32.mrf.mxu0
        %v1854 = vadd.f32 %v1805, %v1853
        %1855 = vmatmul.bf16.gmra.mxu0 %v1386
        %v1856 = vpop.f32.mrf.mxu0
        %v1857 = vadd.f32 %v1808, %v1856
        %v1858 = vpop.f32.mrf.mxu0
        %v1859 = vadd.f32 %v1810, %v1858
        %1860 = vmatmul.bf16.gmra.mxu0 %v1388
        %v1861 = vpop.f32.mrf.mxu0
        %v1862 = vadd.f32 %v1813, %v1861
        %v1863 = vpop.f32.mrf.mxu0
        %v1864 = vadd.f32 %v1815, %v1863
        %1865 = vmatmul.bf16.gmra.mxu0 %v1390
        %v1866 = vpop.f32.mrf.mxu0
        %v1867 = vadd.f32 %v1818, %v1866
        %v1868 = vpop.f32.mrf.mxu0
        %v1869 = vadd.f32 %v1820, %v1868
        %1870 = vmatmul.bf16.gmra.mxu0 %v1392
        %v1871 = vpop.f32.mrf.mxu0
        %v1872 = vadd.f32 %v1823, %v1871
        %v1873 = vpop.f32.mrf.mxu0
        %v1874 = vadd.f32 %v1825, %v1873
        %1875 = vmatmul.bf16.gmra.mxu0 %v1394
        %v1876 = vpop.f32.mrf.mxu0
        %v1877 = vadd.f32 %v1828, %v1876
        %v1878 = vpop.f32.mrf.mxu0
        %v1879 = vadd.f32 %v1830, %v1878
        %1880 = vmatmul.bf16.gmra.mxu0 %v1396
        %v1881 = vpop.f32.mrf.mxu0
        %v1882 = vadd.f32 %v1833, %v1881
        %v1883 = vpop.f32.mrf.mxu0
        %v1884 = vadd.f32 %v1835, %v1883
        %1885 = vmatmul.bf16.gmra.mxu0 %v1398
        %v1886 = vpop.f32.mrf.mxu0
        %v1887 = vadd.f32 %v1838, %v1886
        %v1888 = vpop.f32.mrf.mxu0
        %v1889 = vadd.f32 %v1840, %v1888
        %1890 = vdwg.mxu0
        %v1891 = vmax.f32 %v1754, 0.0
        %v1892 = vmax.f32 %v1852, 0.0
        %v1893 = vmax.f32 %v1756, 0.0
        %v1894 = vmax.f32 %v1854, 0.0
        %v1895 = vmax.f32 %v1759, 0.0
        %v1896 = vmax.f32 %v1857, 0.0
        %v1897 = vmax.f32 %v1761, 0.0
        %v1898 = vmax.f32 %v1859, 0.0
        %v1899 = vmax.f32 %v1764, 0.0
        %v1900 = vmax.f32 %v1862, 0.0
        %v1901 = vmax.f32 %v1766, 0.0
        %v1902 = vmax.f32 %v1864, 0.0
        %v1903 = vmax.f32 %v1769, 0.0
        %v1904 = vmax.f32 %v1867, 0.0
        %v1905 = vmax.f32 %v1771, 0.0
        %v1906 = vmax.f32 %v1869, 0.0
        %v1907 = vmax.f32 %v1774, 0.0
        %v1908 = vmax.f32 %v1872, 0.0
        %v1909 = vmax.f32 %v1776, 0.0
        %v1910 = vmax.f32 %v1874, 0.0
        %v1911 = vmax.f32 %v1779, 0.0
        %v1912 = vmax.f32 %v1877, 0.0
        %v1913 = vmax.f32 %v1781, 0.0
        %v1914 = vmax.f32 %v1879, 0.0
        %v1915 = vmax.f32 %v1784, 0.0
        %v1916 = vmax.f32 %v1882, 0.0
        %v1917 = vmax.f32 %v1786, 0.0
        %v1918 = vmax.f32 %v1884, 0.0
        %v1919 = vmax.f32 %v1789, 0.0
        %v1920 = vmax.f32 %v1887, 0.0
        %v1921 = vmax.f32 %v1791, 0.0
        %v1922 = vmax.f32 %v1889, 0.0
        %v1923 = vpack.c.bf16 %v1411, %v1409
        %v1924 = vpack.c.bf16 %v1460, %v1458
        %v1925 = vpack.c.bf16 %v1416, %v1414
        %v1926 = vpack.c.bf16 %v1465, %v1463
        %v1927 = vpack.c.bf16 %v1421, %v1419
        %v1928 = vpack.c.bf16 %v1470, %v1468
        %v1929 = vpack.c.bf16 %v1426, %v1424
        %v1930 = vpack.c.bf16 %v1475, %v1473
        %v1931 = vpack.c.bf16 %v1431, %v1429
        %v1932 = vpack.c.bf16 %v1480, %v1478
        %v1933 = vpack.c.bf16 %v1436, %v1434
        %v1934 = vpack.c.bf16 %v1485, %v1483
        %v1935 = vpack.c.bf16 %v1441, %v1439
        %v1936 = vpack.c.bf16 %v1490, %v1488
        %v1937 = vpack.c.bf16 %v1446, %v1444
        %v1938 = vpack.c.bf16 %v1495, %v1493
        %v1939 = vld [vmem:[#allocation14] sm:$0xf]
        %v1940 = vld [vmem:[#allocation14 + $0x4] sm:$0xf]
        %v1941 = vld [vmem:[#allocation14 + $0x8] sm:$0xf]
        %v1942 = vld [vmem:[#allocation14 + $0xc] sm:$0xf]
        %v1943 = vld [vmem:[#allocation14 + $0x10] sm:$0xf]
        %v1944 = vld [vmem:[#allocation14 + $0x14] sm:$0xf]
        %v1945 = vld [vmem:[#allocation14 + $0x18] sm:$0xf]
        %v1946 = vld [vmem:[#allocation14 + $0x1c] sm:$0xf]
        %v1947 = vld [vmem:[#allocation14 + $0x20] sm:$0xf]
        %v1948 = vld [vmem:[#allocation14 + $0x24] sm:$0xf]
        %v1949 = vld [vmem:[#allocation14 + $0x28] sm:$0xf]
        %v1950 = vld [vmem:[#allocation14 + $0x2c] sm:$0xf]
        %v1951 = vld [vmem:[#allocation14 + $0x30] sm:$0xf]
        %v1952 = vld [vmem:[#allocation14 + $0x34] sm:$0xf]
        %v1953 = vld [vmem:[#allocation14 + $0x38] sm:$0xf]
        %v1954 = vld [vmem:[#allocation14 + $0x3c] sm:$0xf]
        %v1955 = vld [vmem:[#allocation14 + $0x40] sm:$0xf]
        %v1956 = vld [vmem:[#allocation14 + $0x44] sm:$0xf]
        %v1957 = vld [vmem:[#allocation14 + $0x48] sm:$0xf]
        %v1958 = vld [vmem:[#allocation14 + $0x4c] sm:$0xf]
        %v1959 = vld [vmem:[#allocation14 + $0x50] sm:$0xf]
        %v1960 = vld [vmem:[#allocation14 + $0x54] sm:$0xf]
        %v1961 = vld [vmem:[#allocation14 + $0x58] sm:$0xf]
        %v1962 = vld [vmem:[#allocation14 + $0x5c] sm:$0xf]
        %v1963 = vld [vmem:[#allocation14 + $0x60] sm:$0xf]
        %v1964 = vld [vmem:[#allocation14 + $0x64] sm:$0xf]
        %v1965 = vld [vmem:[#allocation14 + $0x68] sm:$0xf]
        %v1966 = vld [vmem:[#allocation14 + $0x6c] sm:$0xf]
        %v1967 = vld [vmem:[#allocation14 + $0x70] sm:$0xf]
        %v1968 = vld [vmem:[#allocation14 + $0x74] sm:$0xf]
        %v1969 = vld [vmem:[#allocation14 + $0x78] sm:$0xf]
        %v1970 = vld [vmem:[#allocation14 + $0x7c] sm:$0xf]
        %v1971 = vld [vmem:[#allocation15] sm:$0x1]
        %v1973 = vperm.slane %v1971, 0
        %v2007 = vunpack.c.l.b16 %v1939
        %v2008 = vunpack.c.l.b16 %v1940
        %v2009 = vunpack.c.l.b16 %v1941
        %v2010 = vunpack.c.l.b16 %v1942
        %v2011 = vunpack.c.l.b16 %v1943
        %v2012 = vunpack.c.l.b16 %v1944
        %v2013 = vunpack.c.l.b16 %v1945
        %v2014 = vunpack.c.l.b16 %v1946
        %v2015 = vunpack.c.l.b16 %v1947
        %v2016 = vunpack.c.l.b16 %v1948
        %v2017 = vunpack.c.l.b16 %v1949
        %v2018 = vunpack.c.l.b16 %v1950
        %v2019 = vunpack.c.l.b16 %v1951
        %v2020 = vunpack.c.l.b16 %v1952
        %v2021 = vunpack.c.l.b16 %v1953
        %v2022 = vunpack.c.l.b16 %v1954
        %v2023 = vunpack.c.l.b16 %v1955
        %v2024 = vunpack.c.l.b16 %v1956
        %v2025 = vunpack.c.l.b16 %v1957
        %v2026 = vunpack.c.l.b16 %v1958
        %v2027 = vunpack.c.l.b16 %v1959
        %v2028 = vunpack.c.l.b16 %v1960
        %v2029 = vunpack.c.l.b16 %v1961
        %v2030 = vunpack.c.l.b16 %v1962
        %v2031 = vunpack.c.l.b16 %v1963
        %v2032 = vunpack.c.l.b16 %v1964
        %v2033 = vunpack.c.l.b16 %v1965
        %v2034 = vunpack.c.l.b16 %v1966
        %v2035 = vunpack.c.l.b16 %v1967
        %v2036 = vunpack.c.l.b16 %v1968
        %v2037 = vunpack.c.l.b16 %v1969
        %v2038 = vunpack.c.l.b16 %v1970
        %v2039 = vpack.c.b16 %v2008, %v2007
        %v2040 = vpack.c.b16 %v2010, %v2009
        %v2041 = vpack.c.b16 %v2012, %v2011
        %v2042 = vpack.c.b16 %v2014, %v2013
        %v2043 = vpack.c.b16 %v2016, %v2015
        %v2044 = vpack.c.b16 %v2018, %v2017
        %v2045 = vpack.c.b16 %v2020, %v2019
        %v2046 = vpack.c.b16 %v2022, %v2021
        %v2047 = vpack.c.b16 %v2024, %v2023
        %v2048 = vpack.c.b16 %v2026, %v2025
        %v2049 = vpack.c.b16 %v2028, %v2027
        %v2050 = vpack.c.b16 %v2030, %v2029
        %v2051 = vpack.c.b16 %v2032, %v2031
        %v2052 = vpack.c.b16 %v2034, %v2033
        %v2053 = vpack.c.b16 %v2036, %v2035
        %v2054 = vpack.c.b16 %v2038, %v2037
        %2071 = vmatpush.bf16.msra.mxu0 %v2046
        %2072 = vmatpush.bf16.msra.mxu0 %v2045
        %2073 = vmatpush.bf16.msra.mxu0 %v2044
        %2074 = vmatpush.bf16.msra.mxu0 %v2043
        %2075 = vmatpush.bf16.msra.mxu0 %v2042
        %2076 = vmatpush.bf16.msra.mxu0 %v2041
        %2077 = vmatpush.bf16.msra.mxu0 %v2040
        %2078 = vmatpush.bf16.msra.mxu0 %v2039
        %2079 = vmatmul.bf16.gmra.mxu0 %v1923
        %v2080 = vpop.f32.mrf.mxu0
        %v2081 = vadd.f32 %v1973, %v2080
        %v2082 = vpop.f32.mrf.mxu0
        %v2083 = vadd.f32 %v1973, %v2082
        %2084 = vmatmul.bf16.gmra.mxu0 %v1925
        %v2085 = vpop.f32.mrf.mxu0
        %v2086 = vadd.f32 %v1973, %v2085
        %v2087 = vpop.f32.mrf.mxu0
        %v2088 = vadd.f32 %v1973, %v2087
        %2089 = vmatmul.bf16.gmra.mxu0 %v1927
        %v2090 = vpop.f32.mrf.mxu0
        %v2091 = vadd.f32 %v1973, %v2090
        %v2092 = vpop.f32.mrf.mxu0
        %v2093 = vadd.f32 %v1973, %v2092
        %2094 = vmatmul.bf16.gmra.mxu0 %v1929
        %v2095 = vpop.f32.mrf.mxu0
        %v2096 = vadd.f32 %v1973, %v2095
        %v2097 = vpop.f32.mrf.mxu0
        %v2098 = vadd.f32 %v1973, %v2097
        %2099 = vmatmul.bf16.gmra.mxu0 %v1931
        %v2100 = vpop.f32.mrf.mxu0
        %v2101 = vadd.f32 %v1973, %v2100
        %v2102 = vpop.f32.mrf.mxu0
        %v2103 = vadd.f32 %v1973, %v2102
        %2104 = vmatmul.bf16.gmra.mxu0 %v1933
        %v2105 = vpop.f32.mrf.mxu0
        %v2106 = vadd.f32 %v1973, %v2105
        %v2107 = vpop.f32.mrf.mxu0
        %v2108 = vadd.f32 %v1973, %v2107
        %2109 = vmatmul.bf16.gmra.mxu0 %v1935
        %v2110 = vpop.f32.mrf.mxu0
        %v2111 = vadd.f32 %v1973, %v2110
        %v2112 = vpop.f32.mrf.mxu0
        %v2113 = vadd.f32 %v1973, %v2112
        %2114 = vmatmul.bf16.gmra.mxu0 %v1937
        %v2115 = vpop.f32.mrf.mxu0
        %v2116 = vadd.f32 %v1973, %v2115
        %v2117 = vpop.f32.mrf.mxu0
        %v2118 = vadd.f32 %v1973, %v2117
        %2119 = vdwg.mxu0
        %2120 = vmatpush.bf16.msra.mxu0 %v2054
        %2121 = vmatpush.bf16.msra.mxu0 %v2053
        %2122 = vmatpush.bf16.msra.mxu0 %v2052
        %2123 = vmatpush.bf16.msra.mxu0 %v2051
        %2124 = vmatpush.bf16.msra.mxu0 %v2050
        %2125 = vmatpush.bf16.msra.mxu0 %v2049
        %2126 = vmatpush.bf16.msra.mxu0 %v2048
        %2127 = vmatpush.bf16.msra.mxu0 %v2047
        %2128 = vmatmul.bf16.gmra.mxu0 %v1924
        %v2129 = vpop.f32.mrf.mxu0
        %v2130 = vadd.f32 %v2081, %v2129
        %v2131 = vpop.f32.mrf.mxu0
        %v2132 = vadd.f32 %v2083, %v2131
        %2133 = vmatmul.bf16.gmra.mxu0 %v1926
        %v2134 = vpop.f32.mrf.mxu0
        %v2135 = vadd.f32 %v2086, %v2134
        %v2136 = vpop.f32.mrf.mxu0
        %v2137 = vadd.f32 %v2088, %v2136
        %2138 = vmatmul.bf16.gmra.mxu0 %v1928
        %v2139 = vpop.f32.mrf.mxu0
        %v2140 = vadd.f32 %v2091, %v2139
        %v2141 = vpop.f32.mrf.mxu0
        %v2142 = vadd.f32 %v2093, %v2141
        %2143 = vmatmul.bf16.gmra.mxu0 %v1930
        %v2144 = vpop.f32.mrf.mxu0
        %v2145 = vadd.f32 %v2096, %v2144
        %v2146 = vpop.f32.mrf.mxu0
        %v2147 = vadd.f32 %v2098, %v2146
        %2148 = vmatmul.bf16.gmra.mxu0 %v1932
        %v2149 = vpop.f32.mrf.mxu0
        %v2150 = vadd.f32 %v2101, %v2149
        %v2151 = vpop.f32.mrf.mxu0
        %v2152 = vadd.f32 %v2103, %v2151
        %2153 = vmatmul.bf16.gmra.mxu0 %v1934
        %v2154 = vpop.f32.mrf.mxu0
        %v2155 = vadd.f32 %v2106, %v2154
        %v2156 = vpop.f32.mrf.mxu0
        %v2157 = vadd.f32 %v2108, %v2156
        %2158 = vmatmul.bf16.gmra.mxu0 %v1936
        %v2159 = vpop.f32.mrf.mxu0
        %v2160 = vadd.f32 %v2111, %v2159
        %v2161 = vpop.f32.mrf.mxu0
        %v2162 = vadd.f32 %v2113, %v2161
        %2163 = vmatmul.bf16.gmra.mxu0 %v1938
        %v2164 = vpop.f32.mrf.mxu0
        %v2165 = vadd.f32 %v2116, %v2164
        %v2166 = vpop.f32.mrf.mxu0
        %v2167 = vadd.f32 %v2118, %v2166
        %2168 = vdwg.mxu0
        %v2169 = vmax.f32 %v2130, 0.0
        %v2170 = vmax.f32 %v2132, 0.0
        %v2171 = vmax.f32 %v2135, 0.0
        %v2172 = vmax.f32 %v2137, 0.0
        %v2173 = vmax.f32 %v2140, 0.0
        %v2174 = vmax.f32 %v2142, 0.0
        %v2175 = vmax.f32 %v2145, 0.0
        %v2176 = vmax.f32 %v2147, 0.0
        %v2177 = vmax.f32 %v2150, 0.0
        %v2178 = vmax.f32 %v2152, 0.0
        %v2179 = vmax.f32 %v2155, 0.0
        %v2180 = vmax.f32 %v2157, 0.0
        %v2181 = vmax.f32 %v2160, 0.0
        %v2182 = vmax.f32 %v2162, 0.0
        %v2183 = vmax.f32 %v2165, 0.0
        %v2184 = vmax.f32 %v2167, 0.0
        %v2185 = vadd.f32 %v1891, %v2169
        %v2186 = vadd.f32 %v1893, %v2170
        %v2187 = vadd.f32 %v1895, %v2171
        %v2188 = vadd.f32 %v1897, %v2172
        %v2189 = vadd.f32 %v1899, %v2173
        %v2190 = vadd.f32 %v1901, %v2174
        %v2191 = vadd.f32 %v1903, %v2175
        %v2192 = vadd.f32 %v1905, %v2176
        %v2193 = vadd.f32 %v1907, %v2177
        %v2194 = vadd.f32 %v1909, %v2178
        %v2195 = vadd.f32 %v1911, %v2179
        %v2196 = vadd.f32 %v1913, %v2180
        %v2197 = vadd.f32 %v1915, %v2181
        %v2198 = vadd.f32 %v1917, %v2182
        %v2199 = vadd.f32 %v1919, %v2183
        %v2200 = vadd.f32 %v1921, %v2184
        %2201 = vrot.lane.b32.xlu0 %v1892, 64
        %v2202 = vpop.permute.xlu0 %2201
        %2203 = vrot.lane.b32.xlu0 %v1894, 64
        %v2204 = vpop.permute.xlu0 %2203
        %2205 = vrot.lane.b32.xlu0 %v1896, 64
        %v2206 = vpop.permute.xlu0 %2205
        %2207 = vrot.lane.b32.xlu0 %v1898, 64
        %v2208 = vpop.permute.xlu0 %2207
        %2209 = vrot.lane.b32.xlu0 %v1900, 64
        %v2210 = vpop.permute.xlu0 %2209
        %2211 = vrot.lane.b32.xlu0 %v1902, 64
        %v2212 = vpop.permute.xlu0 %2211
        %2213 = vrot.lane.b32.xlu0 %v1904, 64
        %v2214 = vpop.permute.xlu0 %2213
        %2215 = vrot.lane.b32.xlu0 %v1906, 64
        %v2216 = vpop.permute.xlu0 %2215
        %2217 = vrot.lane.b32.xlu0 %v1908, 64
        %v2218 = vpop.permute.xlu0 %2217
        %2219 = vrot.lane.b32.xlu0 %v1910, 64
        %v2220 = vpop.permute.xlu0 %2219
        %2221 = vrot.lane.b32.xlu0 %v1912, 64
        %v2222 = vpop.permute.xlu0 %2221
        %2223 = vrot.lane.b32.xlu0 %v1914, 64
        %v2224 = vpop.permute.xlu0 %2223
        %2225 = vrot.lane.b32.xlu0 %v1916, 64
        %v2226 = vpop.permute.xlu0 %2225
        %2227 = vrot.lane.b32.xlu0 %v1918, 64
        %v2228 = vpop.permute.xlu0 %2227
        %2229 = vrot.lane.b32.xlu0 %v1920, 64
        %v2230 = vpop.permute.xlu0 %2229
        %2231 = vrot.lane.b32.xlu0 %v1922, 64
        %v2232 = vpop.permute.xlu0 %2231
        %v2233 = vmul.f32 %v1892, %v2202
        %v2234 = vmul.f32 %v1894, %v2204
        %v2235 = vmul.f32 %v1896, %v2206
        %v2236 = vmul.f32 %v1898, %v2208
        %v2237 = vmul.f32 %v1900, %v2210
        %v2238 = vmul.f32 %v1902, %v2212
        %v2239 = vmul.f32 %v1904, %v2214
        %v2240 = vmul.f32 %v1906, %v2216
        %v2241 = vmul.f32 %v1908, %v2218
        %v2242 = vmul.f32 %v1910, %v2220
        %v2243 = vmul.f32 %v1912, %v2222
        %v2244 = vmul.f32 %v1914, %v2224
        %v2245 = vmul.f32 %v1916, %v2226
        %v2246 = vmul.f32 %v1918, %v2228
        %v2247 = vmul.f32 %v1920, %v2230
        %v2248 = vmul.f32 %v1922, %v2232
        %v2249 = vld [vmem:[%s12] sm:$0x1]
        %v2251 = vperm.slane %v2249, 0
        %v2253 = vmul.f32 %v2185, %v2251
        %v2254 = vmul.f32 %v2186, %v2251
        %v2255 = vmul.f32 %v2187, %v2251
        %v2256 = vmul.f32 %v2188, %v2251
        %v2257 = vmul.f32 %v2189, %v2251
        %v2258 = vmul.f32 %v2190, %v2251
        %v2259 = vmul.f32 %v2191, %v2251
        %v2260 = vmul.f32 %v2192, %v2251
        %v2261 = vmul.f32 %v2193, %v2251
        %v2262 = vmul.f32 %v2194, %v2251
        %v2263 = vmul.f32 %v2195, %v2251
        %v2264 = vmul.f32 %v2196, %v2251
        %v2265 = vmul.f32 %v2197, %v2251
        %v2266 = vmul.f32 %v2198, %v2251
        %v2267 = vmul.f32 %v2199, %v2251
        %v2268 = vmul.f32 %v2200, %v2251
        %v2269 = vld [vmem:[%s13] sm:$0x1]
        %v2271 = vperm.slane %v2269, 0
        %v2273 = vadd.f32 %v2253, %v2271
        %v2274 = vadd.f32 %v2254, %v2271
        %v2275 = vadd.f32 %v2255, %v2271
        %v2276 = vadd.f32 %v2256, %v2271
        %v2277 = vadd.f32 %v2257, %v2271
        %v2278 = vadd.f32 %v2258, %v2271
        %v2279 = vadd.f32 %v2259, %v2271
        %v2280 = vadd.f32 %v2260, %v2271
        %v2281 = vadd.f32 %v2261, %v2271
        %v2282 = vadd.f32 %v2262, %v2271
        %v2283 = vadd.f32 %v2263, %v2271
        %v2284 = vadd.f32 %v2264, %v2271
        %v2285 = vadd.f32 %v2265, %v2271
        %v2286 = vadd.f32 %v2266, %v2271
        %v2287 = vadd.f32 %v2267, %v2271
        %v2288 = vadd.f32 %v2268, %v2271
        %2289 = vst [vmem:[%s624] sm:$0xff] %v2273
        %2290 = vst [vmem:[%s624 + $0x10] sm:$0xff] %v2274
        %2291 = vst [vmem:[%s624 + $0x20] sm:$0xff] %v2275
        %2292 = vst [vmem:[%s624 + $0x30] sm:$0xff] %v2276
        %2293 = vst [vmem:[%s624 + $0x40] sm:$0xff] %v2277
        %2294 = vst [vmem:[%s624 + $0x50] sm:$0xff] %v2278
        %2295 = vst [vmem:[%s624 + $0x60] sm:$0xff] %v2279
        %2296 = vst [vmem:[%s624 + $0x70] sm:$0xff] %v2280
        %2297 = vst [vmem:[%s624 + $0x80] sm:$0xff] %v2281
        %2298 = vst [vmem:[%s624 + $0x90] sm:$0xff] %v2282
        %2299 = vst [vmem:[%s624 + $0xa0] sm:$0xff] %v2283
        %2300 = vst [vmem:[%s624 + $0xb0] sm:$0xff] %v2284
        %2301 = vst [vmem:[%s624 + $0xc0] sm:$0xff] %v2285
        %2302 = vst [vmem:[%s624 + $0xd0] sm:$0xff] %v2286
        %2303 = vst [vmem:[%s624 + $0xe0] sm:$0xff] %v2287
        %2304 = vst [vmem:[%s624 + $0xf0] sm:$0xff] %v2288
        %v2305 = vld [vmem:[%s12 + $0x1] sm:$0x1]
        %v2307 = vperm.slane %v2305, 0
        %v2309 = vmul.f32 %v2233, %v2307
        %v2310 = vmul.f32 %v2234, %v2307
        %v2311 = vmul.f32 %v2235, %v2307
        %v2312 = vmul.f32 %v2236, %v2307
        %v2313 = vmul.f32 %v2237, %v2307
        %v2314 = vmul.f32 %v2238, %v2307
        %v2315 = vmul.f32 %v2239, %v2307
        %v2316 = vmul.f32 %v2240, %v2307
        %v2317 = vmul.f32 %v2241, %v2307
        %v2318 = vmul.f32 %v2242, %v2307
        %v2319 = vmul.f32 %v2243, %v2307
        %v2320 = vmul.f32 %v2244, %v2307
        %v2321 = vmul.f32 %v2245, %v2307
        %v2322 = vmul.f32 %v2246, %v2307
        %v2323 = vmul.f32 %v2247, %v2307
        %v2324 = vmul.f32 %v2248, %v2307
        %v2325 = vld [vmem:[%s13 + $0x1] sm:$0x1]
        %v2327 = vperm.slane %v2325, 0
        %v2329 = vadd.f32 %v2309, %v2327
        %v2330 = vadd.f32 %v2310, %v2327
        %v2331 = vadd.f32 %v2311, %v2327
        %v2332 = vadd.f32 %v2312, %v2327
        %v2333 = vadd.f32 %v2313, %v2327
        %v2334 = vadd.f32 %v2314, %v2327
        %v2335 = vadd.f32 %v2315, %v2327
        %v2336 = vadd.f32 %v2316, %v2327
        %v2337 = vadd.f32 %v2317, %v2327
        %v2338 = vadd.f32 %v2318, %v2327
        %v2339 = vadd.f32 %v2319, %v2327
        %v2340 = vadd.f32 %v2320, %v2327
        %v2341 = vadd.f32 %v2321, %v2327
        %v2342 = vadd.f32 %v2322, %v2327
        %v2343 = vadd.f32 %v2323, %v2327
        %v2344 = vadd.f32 %v2324, %v2327
        %2345 = vst [vmem:[%s624 + $0x8] sm:$0xff] %v2329
        %2346 = vst [vmem:[%s624 + $0x18] sm:$0xff] %v2330
        %2347 = vst [vmem:[%s624 + $0x28] sm:$0xff] %v2331
        %2348 = vst [vmem:[%s624 + $0x38] sm:$0xff] %v2332
        %2349 = vst [vmem:[%s624 + $0x48] sm:$0xff] %v2333
        %2350 = vst [vmem:[%s624 + $0x58] sm:$0xff] %v2334
        %2351 = vst [vmem:[%s624 + $0x68] sm:$0xff] %v2335
        %2352 = vst [vmem:[%s624 + $0x78] sm:$0xff] %v2336
        %2353 = vst [vmem:[%s624 + $0x88] sm:$0xff] %v2337
        %2354 = vst [vmem:[%s624 + $0x98] sm:$0xff] %v2338
        %2355 = vst [vmem:[%s624 + $0xa8] sm:$0xff] %v2339
        %2356 = vst [vmem:[%s624 + $0xb8] sm:$0xff] %v2340
        %2357 = vst [vmem:[%s624 + $0xc8] sm:$0xff] %v2341
        %2358 = vst [vmem:[%s624 + $0xd8] sm:$0xff] %v2342
        %2359 = vst [vmem:[%s624 + $0xe8] sm:$0xff] %v2343
        %2360 = vst [vmem:[%s624 + $0xf8] sm:$0xff] %v2344
        %s2361 = sand.u32 %s349, 1
        %s2362 = scalar_lea.sflag [#allocation5], %s2361
        %s2363 = sand.u32 %s349, 1
        %s2364 = smul.addr %s2363, 256
        %s2365 = scalar_lea.vmem [#allocation17], %s2364
        // Predicated region
        $region109: #{tpu_custom_call.1} parent=75 // pred_check
          %p2366 = pneg %p359
        $region110: #{tpu_custom_call.1} parent=75 // pred_check_branch
          %2368 = sbr.rel (%p2366) target = $region112
        $region111: #{tpu_custom_call.1} parent=75 // pred_region
          %2370 = vsyncadd %s2362, 0
          %s2371 = smul.addr %s37, 32
          %s2372 = smul.addr %s2371, 8
          %s2373 = scalar_lea.hbm %s14, %s2372
          %s2374 = sshll.u32 %s2365, 4
          %s2375 = int_to_ptr.vmem [resolvable:$true] %s2374
          %s2376 = sshll.u32 %s2373, 4
          %s2377 = int_to_ptr.hbm [resolvable:$true] %s2376
          %2382 = dma.vmem_to_hbm [thread:$0]  %s2375, 4096, %s2377, %s2362, 256, 256, 16
        $region112: #{tpu_custom_call.1} parent=75 // pred_fallthru
          _
      $region76: #{tpu_custom_call.1} parent=5 // pred_fallthru
        _
      %p2383 = scmp.le.s32.totalorder 2, %s32
      // Predicated region
      $region113: #{tpu_custom_call.1} parent=5 // pred_check
        %p2384 = pneg %p2383
      $region114: #{tpu_custom_call.1} parent=5 // pred_check_branch
        %2386 = sbr.rel (%p2384) target = $region116
      $region115: #{tpu_custom_call.1} parent=5 // pred_region
        %s2387 = ssub.s32 %s32, 2
        // Predicated region
        $region117: #{tpu_custom_call.1} parent=115 // pred_check
          %p2388 = pneg %p365
        $region118: #{tpu_custom_call.1} parent=115 // pred_check_branch
          %2390 = sbr.rel (%p2388) target = $region120
        $region119: #{tpu_custom_call.1} parent=115 // pred_region
          %s2391 = sand.u32 %s350, 1
          %s2392 = scalar_lea.sflag [#allocation5], %s2391
          %s2393 = sand.u32 %s350, 1
          %s2394 = smul.addr %s2393, 256
          %s2395 = scalar_lea.vmem [#allocation17], %s2394
          %2397 = dma.done %s2392, 4096
        $region120: #{tpu_custom_call.1} parent=115 // pred_fallthru
          _
      $region116: #{tpu_custom_call.1} parent=5 // pred_fallthru
        _
    $region6: #{tpu_custom_call.1} parent=1 // loop_footer
      %s36 = sadd.s32 1, %s32
    $region7: #{tpu_custom_call.1} parent=1 // loop_footer_branch
      %31 = sbr.rel target = $region3
    $region8: #{tpu_custom_call.1} parent=1 // loop_exit
      _
    %2398 = vsyncpa [#allocation4], 1
    %s2399 = scalar_lea.sflag [#allocation4], 1
    %2400 = vsyncpa %s2399, 1
    %2401 = vsyncpa [#allocation7], 1
    %s2402 = scalar_lea.sflag [#allocation7], 1
    %2403 = vsyncpa %s2402, 1
    %2404 = vsyncpa [#allocation10], 1
    %2405 = vsyncpa [#allocation13], 1
    %2406 = vsyncpa [#allocation16], 1
    %2407 = vsyncpa [#allocation5], 1
    %s2408 = scalar_lea.sflag [#allocation5], 1
    %2409 = vsyncpa %s2408, 1

</llo_original>
